<compile_context>
chip_gen: v7x
topology: tpu7x:2x2x1
jax: 0.10.0
libtpu: 0.0.40
codegen_flags: <defaults>
</compile_context>

<pallas_src>
import jax
import jax.numpy as jnp
from jax import lax
from jax.experimental import pallas as pl
from jax.experimental.pallas import tpu as pltpu


_ROW_BLOCK_CAP = 2048                # max rows per grid step (was 512)
_VMEM_LIMIT = 32 * 1024 * 1024       # explicit scoped-VMEM budget (v7x-safe)
_FC_PAD = 128                        # lane-dense fc hidden width


def _row_block(m):
    """Row-tile size: full extent for tiny M, else ~M/2 rounded up to a
    multiple of 8 and capped, so the grid has >= 2 steps (v7x has 2 TCs)."""
    if m <= 8:
        return m                                   # full extent block (legal)
    half = -(-m // 2)                              # cdiv(m, 2)
    tm = -(-half // 8) * 8                         # round up to multiple of 8
    return min(tm, _ROW_BLOCK_CAP)


# ----------------------------------------------------------------------------
# Kernel 1/2: conv (fused patch-matrix matmul) + 2x2 max-pool + bias + ReLU
# ----------------------------------------------------------------------------
def _conv_relu_pool_kernel(p_ref, w_ref, b_ref, o_ref):
    cout = o_ref.shape[1]
    # One MXU pass over the fused (tm, 4*K) patch block against the
    # block-diagonal (4*K, 4*Cout) weight.
    acc = jnp.dot(p_ref[...], w_ref[...],
                  preferred_element_type=jnp.float32)        # (tm, 4*Cout) f32
    # 2x2 max-pool == elementwise max over the four pool-position column
    # groups (static lane slices of a register-resident f32 value).
    pooled = jnp.maximum(
        jnp.maximum(acc[:, 0 * cout:1 * cout], acc[:, 1 * cout:2 * cout]),
        jnp.maximum(acc[:, 2 * cout:3 * cout], acc[:, 3 * cout:4 * cout]))
    # Bias + ReLU in f32 (v5e-safe); bf16 only at the store.
    o_ref[...] = jnp.maximum(pooled + b_ref[...], 0.0).astype(o_ref.dtype)


def _pooled_patch_matrix(x, ksize):
    """x: (B, H, W, C) NHWC.  Valid conv (stride 1) + 2x2/2 max-pool.

    Returns ONE fused patch matrix of shape (B*Hp*Wp, 4*ksize*ksize*C) whose
    columns are ordered (pool-pos g = 2a+b, i, j, c) — matching the
    block-diagonal weight built in prepare_params — plus (Hp, Wp).
    """
    B, H, W, C = x.shape
    Ho, Wo = H - ksize + 1, W - ksize + 1
    Hp, Wp = Ho // 2, Wo // 2
    slabs = []
    for a in (0, 1):
        for b in (0, 1):
            taps = []
            for i in range(ksize):
                for j in range(ksize):
                    taps.append(x[:, a + i: a + i + 2 * Hp: 2,
                                  b + j: b + j + 2 * Wp: 2, :])
            slabs.append(jnp.concatenate(taps, axis=-1))       # (B,Hp,Wp,25C)
    p = jnp.concatenate(slabs, axis=-1)                        # (B,Hp,Wp,100C)
    return p.reshape(B * Hp * Wp, 4 * ksize * ksize * C), Hp, Wp


def conv_relu_pool(x_nhwc, w_bd, b_row, *, ksize=5):
    """Fused conv(valid, stride 1) + 2x2 max-pool + bias + ReLU.

    x_nhwc: (B,H,W,C) bf16; w_bd: block-diag (4*k*k*C, 4*Cout) bf16;
    b_row: (1,Cout) f32.  Returns (B, Hp, Wp, Cout) bf16, channels-last.
    Note: the (tm, Cout) output stores are lane-masked (Cout = 6/16 < 128);
    total output bytes are tiny so we keep Cout unpadded to preserve the
    channels-last flatten into fc1.
    """
    B = x_nhwc.shape[0]
    K4, Cout4 = w_bd.shape
    Cout = Cout4 // 4
    patch, Hp, Wp = _pooled_patch_matrix(x_nhwc, ksize)
    M = B * Hp * Wp
    tm = _row_block(M)
    out = pl.pallas_call(
        _conv_relu_pool_kernel,
        out_shape=jax.ShapeDtypeStruct((M, Cout), jnp.bfloat16),
        grid=(pl.cdiv(M, tm),),
        in_specs=[pl.BlockSpec((tm, K4), lambda m: (m, 0)),
                  pl.BlockSpec((K4, Cout4), lambda m: (0, 0)),
                  pl.BlockSpec((1, Cout), lambda m: (0, 0))],
        out_specs=pl.BlockSpec((tm, Cout), lambda m: (m, 0)),
        compiler_params=pltpu.CompilerParams(
            dimension_semantics=("parallel",),
            vmem_limit_bytes=_VMEM_LIMIT),
    )(patch, w_bd, b_row)
    return out.reshape(B, Hp, Wp, Cout)


# ----------------------------------------------------------------------------
# Kernel 3: fc1 + fc2 + fc3 fused (intermediates never leave VMEM/vregs)
# ----------------------------------------------------------------------------
def _mlp3_kernel(x_ref, w1_ref, b1_ref, w2_ref, b2_ref, w3_ref, b3_ref, o_ref):
    h = jnp.dot(x_ref[...], w1_ref[...], preferred_element_type=jnp.float32)
    h = jnp.maximum(h + b1_ref[...], 0.0)
    h = jnp.dot(h.astype(w2_ref.dtype), w2_ref[...],
                preferred_element_type=jnp.float32)
    h = jnp.maximum(h + b2_ref[...], 0.0)
    h = jnp.dot(h.astype(w3_ref.dtype), w3_ref[...],
                preferred_element_type=jnp.float32)             # (tb, 10)
    o_ref[...] = (h + b3_ref[...]).astype(o_ref.dtype)


def mlp3(x, w1, b1, w2, b2, w3, b3):
    """relu(x@w1+b1) -> relu(.@w2+b2) -> .@w3+b3 in one pallas_call.

    x: (B, 400) bf16; w1: (400,128), w2: (128,128), w3: (128,10) bf16 (zero
    padded); b1/b2: (1,128), b3: (1,10) f32.  Returns the real (B, 10) f32
    logits directly (no padded slab, no XLA slice afterwards).
    """
    B, K = x.shape
    N = w3.shape[1]
    tb = _row_block(B)
    full = lambda shape: pl.BlockSpec(shape, lambda m: (0, 0))
    return pl.pallas_call(
        _mlp3_kernel,
        out_shape=jax.ShapeDtypeStruct((B, N), jnp.float32),
        grid=(pl.cdiv(B, tb),),
        in_specs=[pl.BlockSpec((tb, K), lambda m: (m, 0)),
                  full(w1.shape), full(b1.shape),
                  full(w2.shape), full(b2.shape),
                  full(w3.shape), full(b3.shape)],
        out_specs=pl.BlockSpec((tb, N), lambda m: (m, 0)),
        compiler_params=pltpu.CompilerParams(
            dimension_semantics=("parallel",),
            vmem_limit_bytes=_VMEM_LIMIT),
    )(x, w1, b1, w2, b2, w3, b3)


# ----------------------------------------------------------------------------
# Parameters: torch-layout init + one-time conversion to kernel layout
# ----------------------------------------------------------------------------
def init_params(key):
    """Deterministic synthetic parameters with PyTorch Conv2d/Linear layouts."""
    ks = jax.random.split(key, 10)

    def u(k, shape, fan_in):
        bound = 1.0 / jnp.sqrt(fan_in)
        return jax.random.uniform(k, shape, jnp.float32, -bound, bound)

    return {
        "conv1_w": u(ks[0], (6, 1, 5, 5), 1 * 5 * 5),
        "conv1_b": u(ks[1], (6,), 1 * 5 * 5),
        "conv2_w": u(ks[2], (16, 6, 5, 5), 6 * 5 * 5),
        "conv2_b": u(ks[3], (16,), 6 * 5 * 5),
        "fc1_w": u(ks[4], (120, 400), 400),
        "fc1_b": u(ks[5], (120,), 400),
        "fc2_w": u(ks[6], (84, 120), 120),
        "fc2_b": u(ks[7], (84,), 120),
        "fc3_w": u(ks[8], (10, 84), 84),
        "fc3_b": u(ks[9], (10,), 84),
    }


def prepare_params(params, dtype=jnp.bfloat16):
    """One-time layout/dtype prep (outside the per-call hot path):
      * conv weights (Cout,Cin,kh,kw) -> (kh*kw*Cin, Cout), replicated into a
        block-diagonal (4*K, 4*Cout) matrix (one block per 2x2 pool position)
      * fc weights pre-transposed to (K, N); fc1 columns permuted to the
        channels-last flatten order; hidden widths zero-padded to 128;
        fc3 kept at its real 10 output columns
      * matmul operands cast to bf16 once; biases kept f32
    """
    def conv_block_diag(w):
        cout, cin, kh, kw = w.shape
        wm = w.transpose(2, 3, 1, 0).reshape(kh * kw * cin, cout)   # (K, Cout)
        return jax.scipy.linalg.block_diag(wm, wm, wm, wm).astype(dtype)

    def pad2(a, rows, cols):
        return jnp.pad(a, ((0, rows - a.shape[0]), (0, cols - a.shape[1])))

    # torch flatten index c*25 + y*5 + x  -->  ours (y*5 + x)*16 + c
    fc1 = (params["fc1_w"].reshape(120, 16, 5, 5)
           .transpose(2, 3, 1, 0).reshape(400, 120))

    return {
        "c1_w": conv_block_diag(params["conv1_w"]),                      # (100, 24)
        "c1_b": params["conv1_b"].reshape(1, 6).astype(jnp.float32),
        "c2_w": conv_block_diag(params["conv2_w"]),                      # (600, 64)
        "c2_b": params["conv2_b"].reshape(1, 16).astype(jnp.float32),
        "fc1_w": pad2(fc1, 400, _FC_PAD).astype(dtype),                  # (400, 128)
        "fc1_b": pad2(params["fc1_b"].reshape(1, 120), 1, _FC_PAD).astype(jnp.float32),
        "fc2_w": pad2(params["fc2_w"].T, _FC_PAD, _FC_PAD).astype(dtype),  # (128, 128)
        "fc2_b": pad2(params["fc2_b"].reshape(1, 84), 1, _FC_PAD).astype(jnp.float32),
        "fc3_w": pad2(params["fc3_w"].T, _FC_PAD, 10).astype(dtype),     # (128, 10)
        "fc3_b": params["fc3_b"].reshape(1, 10).astype(jnp.float32),
    }


# ----------------------------------------------------------------------------
# Forward pass
# ----------------------------------------------------------------------------
def lenet5_forward(p, x):
    """x: (B, 1, 28, 28) NCHW float -> logits (B, 10) f32."""
    B = x.shape[0]
    # C == 1, so NCHW -> NHWC is a free reshape; single bf16 cast for the MXU.
    h = x.reshape(B, 28, 28, 1).astype(jnp.bfloat16)
    h = jnp.pad(h, ((0, 0), (2, 2), (2, 2), (0, 0)))            # conv1 padding=2
    h = conv_relu_pool(h, p["c1_w"], p["c1_b"], ksize=5)        # (B, 14, 14, 6)
    h = conv_relu_pool(h, p["c2_w"], p["c2_b"], ksize=5)        # (B, 5, 5, 16)
    # Channels-last flatten; fc1's weight columns were permuted at init so this
    # matches torch's C-major .view() without any activation transpose.
    h = h.reshape(B, 5 * 5 * 16)                                # (B, 400), free
    return mlp3(h, p["fc1_w"], p["fc1_b"], p["fc2_w"], p["fc2_b"],
                p["fc3_w"], p["fc3_b"])                          # (B, 10) f32


# ----------------------------------------------------------------------------
# Pure-JAX reference (f32) for a correctness self-check
# ----------------------------------------------------------------------------
def lenet5_reference(params, x):
    out = lax.conv_general_dilated(
        x, params["conv1_w"], (1, 1), ((2, 2), (2, 2)),
        dimension_numbers=("NCHW", "OIHW", "NCHW"))
    out = jnp.maximum(out + params["conv1_b"].reshape(1, 6, 1, 1), 0.0)
    out = lax.reduce_window(out, -jnp.inf, lax.max, (1, 1, 2, 2), (1, 1, 2, 2),
                            "VALID")
    out = lax.conv_general_dilated(
        out, params["conv2_w"], (1, 1), "VALID",
        dimension_numbers=("NCHW", "OIHW", "NCHW"))
    out = jnp.maximum(out + params["conv2_b"].reshape(1, 16, 1, 1), 0.0)
    out = lax.reduce_window(out, -jnp.inf, lax.max, (1, 1, 2, 2), (1, 1, 2, 2),
                            "VALID")
    B = out.shape[0]
    out = out.reshape(B, 400)
    out = jnp.maximum(out @ params["fc1_w"].T + params["fc1_b"], 0.0)
    out = jnp.maximum(out @ params["fc2_w"].T + params["fc2_b"], 0.0)
    return out @ params["fc3_w"].T + params["fc3_b"]


if __name__ == "__main__":
    key = jax.random.PRNGKey(0)
    kp, kx = jax.random.split(key)
    params = init_params(kp)
    prepped = prepare_params(params)        # one-time weight layout/dtype prep

    # LeNet-5 fc1 size (16*5*5) implies 28x28 single-channel inputs; batch=2.
    x = jax.random.normal(kx, (2, 1, 28, 28), jnp.float32)

    out = jax.block_until_ready(jax.jit(lenet5_forward)(prepped, x))
    assert out.shape == (2, 10), out.shape

    # Relative check (kernel path uses bf16 MXU inputs with f32 accumulation);
    # a silent weight-layout/permutation bug produces O(max|ref|) errors and
    # would trip this, unlike the old loose 2e-1 absolute bound.
    ref = lenet5_reference(params, x)
    err = float(jnp.max(jnp.abs(out - ref)))
    scale = float(jnp.max(jnp.abs(ref)))
    assert err <= 5e-2 * max(1.0, scale), (
        f"kernel/reference mismatch: max abs err {err} (ref scale {scale})")

    print("KERNEL_OK")
</pallas_src>

<mosaic_0001>
module attributes {stable_mosaic.version = 11 : i64} {
  func.func @_conv_relu_pool_kernel(%arg0: i32, %arg1: memref<200x100xbf16, #tpu.memory_space<vmem>>, %arg2: memref<100x24xbf16, #tpu.memory_space<vmem>>, %arg3: memref<1x6xf32, #tpu.memory_space<vmem>>, %arg4: memref<200x6xbf16, #tpu.memory_space<vmem>>) attributes {dimension_semantics = [#tpu.dimension_semantics<parallel>], iteration_bounds = array<i64: 2>, scalar_prefetch = 0 : i64, scratch_operands = 0 : i64, tpu.core_type = #tpu.core_type<tc>, window_params = [{transform_indices = @transform_0, window_bounds = array<i64: 200, 100>}, {pipeline_mode = #tpu.pipeline_mode<synchronous>, transform_indices = @transform_1, window_bounds = array<i64: 100, 24>}, {pipeline_mode = #tpu.pipeline_mode<synchronous>, transform_indices = @transform_2, window_bounds = array<i64: 1, 6>}, {transform_indices = @transform_3, window_bounds = array<i64: 200, 6>}]} {
    %c0 = arith.constant 0 : index
    %c0_0 = arith.constant 0 : index
    %0 = vector.load %arg1[%c0, %c0_0] : memref<200x100xbf16, #tpu.memory_space<vmem>>, vector<200x100xbf16>
    %c0_1 = arith.constant 0 : index
    %c0_2 = arith.constant 0 : index
    %1 = vector.load %arg2[%c0_1, %c0_2] : memref<100x24xbf16, #tpu.memory_space<vmem>>, vector<100x24xbf16>
    %cst = arith.constant dense<0.000000e+00> : vector<200x24xf32>
    %2 = tpu.matmul %0, %1, %cst {dimension_numbers = #tpu.dot_dimension_numbers<[1], [0], [0], [1], [0, 0, 1, 1], [], []>} : vector<200x100xbf16>, vector<100x24xbf16>, vector<200x24xf32> -> vector<200x24xf32>
    %3 = vector.extract_strided_slice %2 {offsets = [0, 0], sizes = [200, 6], strides = [1, 1]} : vector<200x24xf32> to vector<200x6xf32>
    %4 = vector.extract_strided_slice %2 {offsets = [0, 6], sizes = [200, 6], strides = [1, 1]} : vector<200x24xf32> to vector<200x6xf32>
    %5 = arith.maximumf %3, %4 : vector<200x6xf32>
    %6 = vector.extract_strided_slice %2 {offsets = [0, 12], sizes = [200, 6], strides = [1, 1]} : vector<200x24xf32> to vector<200x6xf32>
    %7 = vector.extract_strided_slice %2 {offsets = [0, 18], sizes = [200, 6], strides = [1, 1]} : vector<200x24xf32> to vector<200x6xf32>
    %8 = arith.maximumf %6, %7 : vector<200x6xf32>
    %9 = arith.maximumf %5, %8 : vector<200x6xf32>
    %c0_3 = arith.constant 0 : index
    %c0_4 = arith.constant 0 : index
    %10 = vector.load %arg3[%c0_3, %c0_4] : memref<1x6xf32, #tpu.memory_space<vmem>>, vector<1x6xf32>
    %11 = vector.broadcast %10 : vector<1x6xf32> to vector<200x6xf32>
    %12 = arith.addf %9, %11 : vector<200x6xf32>
    %cst_5 = arith.constant 0.000000e+00 : f32
    %13 = vector.broadcast %cst_5 : f32 to vector<200x6xf32>
    %14 = arith.maximumf %12, %13 : vector<200x6xf32>
    %15 = arith.truncf %14 : vector<200x6xf32> to vector<200x6xbf16>
    %c0_6 = arith.constant 0 : index
    %c0_7 = arith.constant 0 : index
    %16 = vector.load %arg4[%c0_6, %c0_7] : memref<200x6xbf16, #tpu.memory_space<vmem>>, vector<200x6xbf16>
    tpu.vector_store %arg4[%c0_6, %c0_7], %15 {strides = array<i32>} : memref<200x6xbf16, #tpu.memory_space<vmem>>, vector<200x6xbf16>,
    return
  }
  func.func @transform_0(%arg0: i32) -> (i32, i32) {
    %c0_i32 = arith.constant 0 : i32
    %c0_i32_0 = arith.constant 0 : i32
    return %arg0, %c0_i32 : i32, i32
  }
  func.func @transform_1(%arg0: i32) -> (i32, i32) {
    %c0_i32 = arith.constant 0 : i32
    %c0_i32_0 = arith.constant 0 : i32
    %c0_i32_1 = arith.constant 0 : i32
    return %c0_i32, %c0_i32_0 : i32, i32
  }
  func.func @transform_2(%arg0: i32) -> (i32, i32) {
    %c0_i32 = arith.constant 0 : i32
    %c0_i32_0 = arith.constant 0 : i32
    %c0_i32_1 = arith.constant 0 : i32
    return %c0_i32, %c0_i32_0 : i32, i32
  }
  func.func @transform_3(%arg0: i32) -> (i32, i32) {
    %c0_i32 = arith.constant 0 : i32
    %c0_i32_0 = arith.constant 0 : i32
    return %arg0, %c0_i32 : i32, i32
  }
}

module attributes {stable_mosaic.version = 11 : i64} {
  func.func @_conv_relu_pool_kernel(%arg0: i32, %arg1: memref<32x600xbf16, #tpu.memory_space<vmem>>, %arg2: memref<600x64xbf16, #tpu.memory_space<vmem>>, %arg3: memref<1x16xf32, #tpu.memory_space<vmem>>, %arg4: memref<32x16xbf16, #tpu.memory_space<vmem>>) attributes {dimension_semantics = [#tpu.dimension_semantics<parallel>], iteration_bounds = array<i64: 2>, scalar_prefetch = 0 : i64, scratch_operands = 0 : i64, tpu.core_type = #tpu.core_type<tc>, window_params = [{transform_indices = @transform_0, window_bounds = array<i64: 32, 600>}, {pipeline_mode = #tpu.pipeline_mode<synchronous>, transform_indices = @transform_1, window_bounds = array<i64: 600, 64>}, {pipeline_mode = #tpu.pipeline_mode<synchronous>, transform_indices = @transform_2, window_bounds = array<i64: 1, 16>}, {transform_indices = @transform_3, window_bounds = array<i64: 32, 16>}]} {
    %c0 = arith.constant 0 : index
    %c0_0 = arith.constant 0 : index
    %0 = vector.load %arg1[%c0, %c0_0] : memref<32x600xbf16, #tpu.memory_space<vmem>>, vector<32x600xbf16>
    %c0_1 = arith.constant 0 : index
    %c0_2 = arith.constant 0 : index
    %1 = vector.load %arg2[%c0_1, %c0_2] : memref<600x64xbf16, #tpu.memory_space<vmem>>, vector<600x64xbf16>
    %cst = arith.constant dense<0.000000e+00> : vector<32x64xf32>
    %2 = tpu.matmul %0, %1, %cst {dimension_numbers = #tpu.dot_dimension_numbers<[1], [0], [0], [1], [0, 0, 1, 1], [], []>} : vector<32x600xbf16>, vector<600x64xbf16>, vector<32x64xf32> -> vector<32x64xf32>
    %3 = vector.extract_strided_slice %2 {offsets = [0, 0], sizes = [32, 16], strides = [1, 1]} : vector<32x64xf32> to vector<32x16xf32>
    %4 = vector.extract_strided_slice %2 {offsets = [0, 16], sizes = [32, 16], strides = [1, 1]} : vector<32x64xf32> to vector<32x16xf32>
    %5 = arith.maximumf %3, %4 : vector<32x16xf32>
    %6 = vector.extract_strided_slice %2 {offsets = [0, 32], sizes = [32, 16], strides = [1, 1]} : vector<32x64xf32> to vector<32x16xf32>
    %7 = vector.extract_strided_slice %2 {offsets = [0, 48], sizes = [32, 16], strides = [1, 1]} : vector<32x64xf32> to vector<32x16xf32>
    %8 = arith.maximumf %6, %7 : vector<32x16xf32>
    %9 = arith.maximumf %5, %8 : vector<32x16xf32>
    %c0_3 = arith.constant 0 : index
    %c0_4 = arith.constant 0 : index
    %10 = vector.load %arg3[%c0_3, %c0_4] : memref<1x16xf32, #tpu.memory_space<vmem>>, vector<1x16xf32>
    %11 = vector.broadcast %10 : vector<1x16xf32> to vector<32x16xf32>
    %12 = arith.addf %9, %11 : vector<32x16xf32>
    %cst_5 = arith.constant 0.000000e+00 : f32
    %13 = vector.broadcast %cst_5 : f32 to vector<32x16xf32>
    %14 = arith.maximumf %12, %13 : vector<32x16xf32>
    %15 = arith.truncf %14 : vector<32x16xf32> to vector<32x16xbf16>
    %c0_6 = arith.constant 0 : index
    %c0_7 = arith.constant 0 : index
    %16 = vector.load %arg4[%c0_6, %c0_7] : memref<32x16xbf16, #tpu.memory_space<vmem>>, vector<32x16xbf16>
    tpu.vector_store %arg4[%c0_6, %c0_7], %15 {strides = array<i32>} : memref<32x16xbf16, #tpu.memory_space<vmem>>, vector<32x16xbf16>,
    return
  }
  func.func @transform_0(%arg0: i32) -> (i32, i32) {
    %c0_i32 = arith.constant 0 : i32
    %c0_i32_0 = arith.constant 0 : i32
    return %arg0, %c0_i32 : i32, i32
  }
  func.func @transform_1(%arg0: i32) -> (i32, i32) {
    %c0_i32 = arith.constant 0 : i32
    %c0_i32_0 = arith.constant 0 : i32
    %c0_i32_1 = arith.constant 0 : i32
    return %c0_i32, %c0_i32_0 : i32, i32
  }
  func.func @transform_2(%arg0: i32) -> (i32, i32) {
    %c0_i32 = arith.constant 0 : i32
    %c0_i32_0 = arith.constant 0 : i32
    %c0_i32_1 = arith.constant 0 : i32
    return %c0_i32, %c0_i32_0 : i32, i32
  }
  func.func @transform_3(%arg0: i32) -> (i32, i32) {
    %c0_i32 = arith.constant 0 : i32
    %c0_i32_0 = arith.constant 0 : i32
    return %arg0, %c0_i32 : i32, i32
  }
}

module attributes {stable_mosaic.version = 11 : i64} {
  func.func @_mlp3_kernel(%arg0: i32, %arg1: memref<2x400xbf16, #tpu.memory_space<vmem>>, %arg2: memref<400x128xbf16, #tpu.memory_space<vmem>>, %arg3: memref<1x128xf32, #tpu.memory_space<vmem>>, %arg4: memref<128x128xbf16, #tpu.memory_space<vmem>>, %arg5: memref<1x128xf32, #tpu.memory_space<vmem>>, %arg6: memref<128x10xbf16, #tpu.memory_space<vmem>>, %arg7: memref<1x10xf32, #tpu.memory_space<vmem>>, %arg8: memref<2x10xf32, #tpu.memory_space<vmem>>) attributes {dimension_semantics = [#tpu.dimension_semantics<parallel>], iteration_bounds = array<i64: 1>, scalar_prefetch = 0 : i64, scratch_operands = 0 : i64, tpu.core_type = #tpu.core_type<tc>, window_params = [{transform_indices = @transform_0, window_bounds = array<i64: 2, 400>}, {pipeline_mode = #tpu.pipeline_mode<synchronous>, transform_indices = @transform_1, window_bounds = array<i64: 400, 128>}, {pipeline_mode = #tpu.pipeline_mode<synchronous>, transform_indices = @transform_2, window_bounds = array<i64: 1, 128>}, {pipeline_mode = #tpu.pipeline_mode<synchronous>, transform_indices = @transform_3, window_bounds = array<i64: 128, 128>}, {pipeline_mode = #tpu.pipeline_mode<synchronous>, transform_indices = @transform_4, window_bounds = array<i64: 1, 128>}, {pipeline_mode = #tpu.pipeline_mode<synchronous>, transform_indices = @transform_5, window_bounds = array<i64: 128, 10>}, {pipeline_mode = #tpu.pipeline_mode<synchronous>, transform_indices = @transform_6, window_bounds = array<i64: 1, 10>}, {transform_indices = @transform_7, window_bounds = array<i64: 2, 10>}]} {
    %c0 = arith.constant 0 : index
    %c0_0 = arith.constant 0 : index
    %0 = vector.load %arg1[%c0, %c0_0] : memref<2x400xbf16, #tpu.memory_space<vmem>>, vector<2x400xbf16>
    %c0_1 = arith.constant 0 : index
    %c0_2 = arith.constant 0 : index
    %1 = vector.load %arg2[%c0_1, %c0_2] : memref<400x128xbf16, #tpu.memory_space<vmem>>, vector<400x128xbf16>
    %cst = arith.constant dense<0.000000e+00> : vector<2x128xf32>
    %2 = tpu.matmul %0, %1, %cst {dimension_numbers = #tpu.dot_dimension_numbers<[1], [0], [0], [1], [0, 0, 1, 1], [], []>} : vector<2x400xbf16>, vector<400x128xbf16>, vector<2x128xf32> -> vector<2x128xf32>
    %c0_3 = arith.constant 0 : index
    %c0_4 = arith.constant 0 : index
    %3 = vector.load %arg3[%c0_3, %c0_4] : memref<1x128xf32, #tpu.memory_space<vmem>>, vector<1x128xf32>
    %4 = vector.broadcast %3 : vector<1x128xf32> to vector<2x128xf32>
    %5 = arith.addf %2, %4 : vector<2x128xf32>
    %cst_5 = arith.constant 0.000000e+00 : f32
    %6 = vector.broadcast %cst_5 : f32 to vector<2x128xf32>
    %7 = arith.maximumf %5, %6 : vector<2x128xf32>
    %8 = arith.truncf %7 : vector<2x128xf32> to vector<2x128xbf16>
    %c0_6 = arith.constant 0 : index
    %c0_7 = arith.constant 0 : index
    %9 = vector.load %arg4[%c0_6, %c0_7] : memref<128x128xbf16, #tpu.memory_space<vmem>>, vector<128x128xbf16>
    %cst_8 = arith.constant dense<0.000000e+00> : vector<2x128xf32>
    %10 = tpu.matmul %8, %9, %cst_8 {dimension_numbers = #tpu.dot_dimension_numbers<[1], [0], [0], [1], [0, 0, 1, 1], [], []>} : vector<2x128xbf16>, vector<128x128xbf16>, vector<2x128xf32> -> vector<2x128xf32>
    %c0_9 = arith.constant 0 : index
    %c0_10 = arith.constant 0 : index
    %11 = vector.load %arg5[%c0_9, %c0_10] : memref<1x128xf32, #tpu.memory_space<vmem>>, vector<1x128xf32>
    %12 = vector.broadcast %11 : vector<1x128xf32> to vector<2x128xf32>
    %13 = arith.addf %10, %12 : vector<2x128xf32>
    %cst_11 = arith.constant 0.000000e+00 : f32
    %14 = vector.broadcast %cst_11 : f32 to vector<2x128xf32>
    %15 = arith.maximumf %13, %14 : vector<2x128xf32>
    %16 = arith.truncf %15 : vector<2x128xf32> to vector<2x128xbf16>
    %c0_12 = arith.constant 0 : index
    %c0_13 = arith.constant 0 : index
    %17 = vector.load %arg6[%c0_12, %c0_13] : memref<128x10xbf16, #tpu.memory_space<vmem>>, vector<128x10xbf16>
    %cst_14 = arith.constant dense<0.000000e+00> : vector<2x10xf32>
    %18 = tpu.matmul %16, %17, %cst_14 {dimension_numbers = #tpu.dot_dimension_numbers<[1], [0], [0], [1], [0, 0, 1, 1], [], []>} : vector<2x128xbf16>, vector<128x10xbf16>, vector<2x10xf32> -> vector<2x10xf32>
    %c0_15 = arith.constant 0 : index
    %c0_16 = arith.constant 0 : index
    %19 = vector.load %arg7[%c0_15, %c0_16] : memref<1x10xf32, #tpu.memory_space<vmem>>, vector<1x10xf32>
    %20 = vector.broadcast %19 : vector<1x10xf32> to vector<2x10xf32>
    %21 = arith.addf %18, %20 : vector<2x10xf32>
    %c0_17 = arith.constant 0 : index
    %c0_18 = arith.constant 0 : index
    %22 = vector.load %arg8[%c0_17, %c0_18] : memref<2x10xf32, #tpu.memory_space<vmem>>, vector<2x10xf32>
    tpu.vector_store %arg8[%c0_17, %c0_18], %21 {strides = array<i32>} : memref<2x10xf32, #tpu.memory_space<vmem>>, vector<2x10xf32>,
    return
  }
  func.func @transform_0(%arg0: i32) -> (i32, i32) {
    %c0_i32 = arith.constant 0 : i32
    %c0_i32_0 = arith.constant 0 : i32
    return %arg0, %c0_i32 : i32, i32
  }
  func.func @transform_1(%arg0: i32) -> (i32, i32) {
    %c0_i32 = arith.constant 0 : i32
    %c0_i32_0 = arith.constant 0 : i32
    %c0_i32_1 = arith.constant 0 : i32
    return %c0_i32, %c0_i32_0 : i32, i32
  }
  func.func @transform_2(%arg0: i32) -> (i32, i32) {
    %c0_i32 = arith.constant 0 : i32
    %c0_i32_0 = arith.constant 0 : i32
    %c0_i32_1 = arith.constant 0 : i32
    return %c0_i32, %c0_i32_0 : i32, i32
  }
  func.func @transform_3(%arg0: i32) -> (i32, i32) {
    %c0_i32 = arith.constant 0 : i32
    %c0_i32_0 = arith.constant 0 : i32
    %c0_i32_1 = arith.constant 0 : i32
    return %c0_i32, %c0_i32_0 : i32, i32
  }
  func.func @transform_4(%arg0: i32) -> (i32, i32) {
    %c0_i32 = arith.constant 0 : i32
    %c0_i32_0 = arith.constant 0 : i32
    %c0_i32_1 = arith.constant 0 : i32
    return %c0_i32, %c0_i32_0 : i32, i32
  }
  func.func @transform_5(%arg0: i32) -> (i32, i32) {
    %c0_i32 = arith.constant 0 : i32
    %c0_i32_0 = arith.constant 0 : i32
    %c0_i32_1 = arith.constant 0 : i32
    return %c0_i32, %c0_i32_0 : i32, i32
  }
  func.func @transform_6(%arg0: i32) -> (i32, i32) {
    %c0_i32 = arith.constant 0 : i32
    %c0_i32_0 = arith.constant 0 : i32
    %c0_i32_1 = arith.constant 0 : i32
    return %c0_i32, %c0_i32_0 : i32, i32
  }
  func.func @transform_7(%arg0: i32) -> (i32, i32) {
    %c0_i32 = arith.constant 0 : i32
    %c0_i32_0 = arith.constant 0 : i32
    return %arg0, %c0_i32 : i32, i32
  }
}

</mosaic_0001>

<llo_original>
// kernel: lenet5_forward.3
$region0: #{lenet5_forward.3}
  #allocation0 [shape = 'u32[]', space=smem, size = 0x4, offset = 0x4, fixed_abs, tag = 'smem constant byte address 0x4 - core index']
  #allocation1 [shape = 'u32[144,128]{1,0:T(1,128)}', space=vmem, size = 0x12000, scoped, tag = 'internal scratch']
  %s0 = inlined_call_operand.vmem [shape: bf16[392,100], index: 0, kind: input, shape index: {}]
  %s1 = inlined_call_operand.vmem [shape: bf16[100,24], index: 1, kind: input, shape index: {}]
  %s2 = inlined_call_operand.vmem [shape: f32[1,6], index: 2, kind: input, shape index: {}]
  %s3 = inlined_call_operand.vmem [shape: bf16[392,6], index: 3, kind: output, shape index: {}]
  %s4 = sld [smem:[#allocation0]]
  $region89: #{lenet5_forward.3} parent=0
    _
  %s6 = ssub.s32 1, %s4
  %s7 = scalar_select 0, %s6, %s4
  $region1: #{lenet5_forward.3} parent=0
    #allocation2 [shape = 'u8[102400]{0}', space=vmem, size = 0x19000, scoped, tag = 'output window, operand 0']
    loop: start=0, step=1, limit=4
    $region2: #{lenet5_forward.3} parent=1 // loop_pre_header
      _
    $region3: #{lenet5_forward.3} parent=1 // loop_header
      %s9 = sphi 0, %s13
      %p10 = scmp.ge.s32.totalorder %s9, 4
      %s19 = sphi 0, %s21
      %s22 = sphi 0, %s19
      %s23 = sphi 0, %s22
      %s39 = sphi 0, %s23
      %s43 = sphi 0, %s43
      %s45 = sphi 0, %s43
      %s46 = sphi 0, %s45
      %s60 = sphi 0, %s46
      %s64 = sphi 0, %s64
      %s66 = sphi 0, %s64
      %s67 = sphi 0, %s66
      %s81 = sphi 0, %s67
      %s87 = sphi 0, %s89
      %s90 = sphi 0, %s87
      %s91 = sphi 0, %s90
      %s107 = sphi 0, %s91
    $region4: #{lenet5_forward.3} parent=1 // loop_header_branch
      %12 = sbr.rel (%p10) target = $region8
    $region5: #{lenet5_forward.3} parent=1 // loop_body
      %s14 = ssub.s32 %s9, 1
      %s15 = ssub.s32 %s9, 2
      %s16 = sadd.s32 %s9, 1
      %s17 = ssub.s32 %s9, %s16
      %p18 = scmp.eq.s32.totalorder %s17, 0
      %s20 = sadd.s32 %s19, 1
      %s21 = scalar_select %p18, %s19, %s20
      %p24 = pneg %p18
      %p25 = scmp.eq.s32.totalorder %s9, 1
      %p26 = por %p24, %p25
      %p27 = scmp.ne.s32.totalorder %s19, %s22
      %p28 = scmp.eq.s32.totalorder %s9, 0
      %p29 = por %p27, %p28
      %p30 = scmp.ne.s32.totalorder %s19, %s22
      %p31 = scmp.eq.s32.totalorder %s14, 1
      %p32 = por %p30, %p31
      %p33 = scmp.ne.s32.totalorder %s22, %s23
      %p34 = scmp.eq.s32.totalorder %s14, 0
      %p35 = por %p33, %p34
      %p36 = scmp.ne.s32.totalorder %s22, %s23
      %p37 = scmp.eq.s32.totalorder %s15, 1
      %p38 = por %p36, %p37
      %p40 = scmp.ne.s32.totalorder %s23, %s39
      %p41 = scmp.eq.s32.totalorder %s15, 0
      %p42 = por %p40, %p41
      %s44 = sadd.s32 %s43, 1
      %p47 = scmp.eq.s32.totalorder %s9, 1
      %p48 = scmp.ne.s32.totalorder %s43, %s45
      %p49 = scmp.eq.s32.totalorder %s9, 0
      %p50 = por %p48, %p49
      %p51 = scmp.ne.s32.totalorder %s43, %s45
      %p52 = scmp.eq.s32.totalorder %s14, 1
      %p53 = por %p51, %p52
      %p54 = scmp.ne.s32.totalorder %s45, %s46
      %p55 = scmp.eq.s32.totalorder %s14, 0
      %p56 = por %p54, %p55
      %p57 = scmp.ne.s32.totalorder %s45, %s46
      %p58 = scmp.eq.s32.totalorder %s15, 1
      %p59 = por %p57, %p58
      %p61 = scmp.ne.s32.totalorder %s46, %s60
      %p62 = scmp.eq.s32.totalorder %s15, 0
      %p63 = por %p61, %p62
      %s65 = sadd.s32 %s64, 1
      %p68 = scmp.eq.s32.totalorder %s9, 1
      %p69 = scmp.ne.s32.totalorder %s64, %s66
      %p70 = scmp.eq.s32.totalorder %s9, 0
      %p71 = por %p69, %p70
      %p72 = scmp.ne.s32.totalorder %s64, %s66
      %p73 = scmp.eq.s32.totalorder %s14, 1
      %p74 = por %p72, %p73
      %p75 = scmp.ne.s32.totalorder %s66, %s67
      %p76 = scmp.eq.s32.totalorder %s14, 0
      %p77 = por %p75, %p76
      %p78 = scmp.ne.s32.totalorder %s66, %s67
      %p79 = scmp.eq.s32.totalorder %s15, 1
      %p80 = por %p78, %p79
      %p82 = scmp.ne.s32.totalorder %s67, %s81
      %p83 = scmp.eq.s32.totalorder %s15, 0
      %p84 = por %p82, %p83
      %s85 = ssub.s32 %s9, %s16
      %p86 = scmp.eq.s32.totalorder %s85, 0
      %s88 = sadd.s32 %s87, 1
      %s89 = scalar_select %p86, %s87, %s88
      %p92 = pneg %p86
      %p93 = scmp.eq.s32.totalorder %s9, 1
      %p94 = por %p92, %p93
      %p95 = scmp.ne.s32.totalorder %s87, %s90
      %p96 = scmp.eq.s32.totalorder %s9, 0
      %p97 = por %p95, %p96
      %p98 = scmp.ne.s32.totalorder %s87, %s90
      %p99 = scmp.eq.s32.totalorder %s14, 1
      %p100 = por %p98, %p99
      %p101 = scmp.ne.s32.totalorder %s90, %s91
      %p102 = scmp.eq.s32.totalorder %s14, 0
      %p103 = por %p101, %p102
      %p104 = scmp.ne.s32.totalorder %s90, %s91
      %p105 = scmp.eq.s32.totalorder %s15, 1
      %p106 = por %p104, %p105
      %p108 = scmp.ne.s32.totalorder %s91, %s107
      %p109 = scmp.eq.s32.totalorder %s15, 0
      %p110 = por %p108, %p109
      %p111 = scmp.le.s32.totalorder 1, %s9
      %p112 = scmp.lt.s32.totalorder %s9, 3
      %p113 = pnand %p111, %p112
      %p114 = pneg %p113
      // Predicated region
      $region9: #{lenet5_forward.3} parent=5 // pred_check
        _
      $region10: #{lenet5_forward.3} parent=5 // pred_check_branch
        %116 = sbr.rel (%p113) target = $region12
      $region11: #{lenet5_forward.3} parent=5 // pred_region
        %s117 = ssub.s32 %s9, 1
        // Predicated region
        $region13: #{lenet5_forward.3} parent=11 // pred_check
          %p118 = pneg %p56
        $region14: #{lenet5_forward.3} parent=11 // pred_check_branch
          %120 = sbr.rel (%p118) target = $region16
        $region15: #{lenet5_forward.3} parent=11 // pred_region
          _
        $region16: #{lenet5_forward.3} parent=11 // pred_fallthru
          _
        // Predicated region
        $region17: #{lenet5_forward.3} parent=11 // pred_check
          %p121 = pneg %p77
        $region18: #{lenet5_forward.3} parent=11 // pred_check_branch
          %123 = sbr.rel (%p121) target = $region20
        $region19: #{lenet5_forward.3} parent=11 // pred_region
          _
        $region20: #{lenet5_forward.3} parent=11 // pred_fallthru
          _
      $region12: #{lenet5_forward.3} parent=5 // pred_fallthru
        _
      %p124 = scmp.lt.s32.totalorder %s9, 2
      // Predicated region
      $region21: #{lenet5_forward.3} parent=5 // pred_check
        %p125 = pneg %p124
      $region22: #{lenet5_forward.3} parent=5 // pred_check_branch
        %127 = sbr.rel (%p125) target = $region24
      $region23: #{lenet5_forward.3} parent=5 // pred_region
        // Predicated region
        $region25: #{lenet5_forward.3} parent=23 // pred_check
          %p128 = pneg %p29
        $region26: #{lenet5_forward.3} parent=23 // pred_check_branch
          %130 = sbr.rel (%p128) target = $region28
        $region27: #{lenet5_forward.3} parent=23 // pred_region
          %s131 = smul.u32 25, %s9
          %s132 = ssub.s32 49, %s131
          %p133 = scmp.lt.s32.totalorder %s132, 25
          %s134 = scalar_select %p133, %s132, 25
          %s135 = smul.u32 64, %s134
          %p136 = scmp.lt.s32.totalorder %s131, 48
          %s137 = scalar_select %p136, %s131, 48
          %s138 = smul.addr %s137, 4
          %s139 = scalar_lea.vmem %s0, %s138
          %s140 = smul.u32 25, %s9
          %s141 = ssub.s32 49, %s140
          %p142 = scmp.lt.s32.totalorder %s141, 25
          %s143 = scalar_select %p142, %s141, 25
          %s144 = smul.u32 64, %s143
        $region28: #{lenet5_forward.3} parent=23 // pred_fallthru
          _
      $region24: #{lenet5_forward.3} parent=5 // pred_fallthru
        _
      %p145 = scmp.le.s32.totalorder 1, %s9
      %p146 = scmp.lt.s32.totalorder %s9, 3
      %p147 = pnand %p145, %p146
      %p148 = pneg %p147
      // Predicated region
      $region29: #{lenet5_forward.3} parent=5 // pred_check
        _
      $region30: #{lenet5_forward.3} parent=5 // pred_check_branch
        %150 = sbr.rel (%p147) target = $region32
      $region31: #{lenet5_forward.3} parent=5 // pred_region
        %s151 = ssub.s32 %s9, 1
        %s152 = smul.u32 25, %s14
        %s153 = ssub.s32 49, %s152
        %p154 = scmp.lt.s32.totalorder %s153, 25
        %s155 = scalar_select %p154, %s153, 25
        %s156 = smul.u32 64, %s155
        %p157 = scmp.lt.s32.totalorder %s152, 48
        %s158 = scalar_select %p157, %s152, 48
        %s159 = smul.addr %s158, 4
        %s160 = scalar_lea.vmem %s0, %s159
        %p161 = pneg %p35
        %p162 = pneg %p32
        %p163 = pneg %p56
        %p164 = pneg %p53
        %p165 = pneg %p77
        %p166 = pneg %p74
        %p167 = pneg %p103
        %p168 = pneg %p100
        %s169 = sand.u32 %s90, 1
        %s170 = sand.u32 %s90, 1
        %s171 = smul.addr %s170, 100
        %s172 = scalar_lea.vmem [#allocation2], %s171
        %s173 = smul.u32 25, %s14
        %s174 = ssub.s32 49, %s173
        %p175 = scmp.lt.s32.totalorder %s174, 25
        %s176 = scalar_select %p175, %s174, 25
        %s177 = smul.u32 64, %s176
        %p178 = scmp.lt.s32.totalorder %s173, 48
        %s179 = scalar_select %p178, %s173, 48
        %s180 = smul.addr %s179, 4
        %s181 = scalar_lea.vmem %s0, %s180
        %s182 = smul.u32 25, %s14
        %s183 = ssub.s32 49, %s182
        %p184 = scmp.lt.s32.totalorder %s183, 25
        %s185 = scalar_select %p184, %s183, 25
        %s186 = smul.u32 64, %s185
        %s187 = smul.u32 25, %s14
        %s188 = ssub.s32 49, %s187
        %p189 = scmp.lt.s32.totalorder %s188, 25
        %s190 = scalar_select %p189, %s188, 25
        %s191 = smul.u32 64, %s190
        %v193 = vld [vmem:[%s181] sm:$0xf]
        %v194 = vld [vmem:[%s181 + $0x4] sm:$0xf]
        %v195 = vld [vmem:[%s181 + $0x8] sm:$0xf]
        %v196 = vld [vmem:[%s181 + $0xc] sm:$0xf]
        %v197 = vld [vmem:[%s181 + $0x10] sm:$0xf]
        %v198 = vld [vmem:[%s181 + $0x14] sm:$0xf]
        %v199 = vld [vmem:[%s181 + $0x18] sm:$0xf]
        %v200 = vld [vmem:[%s181 + $0x1c] sm:$0xf]
        %v201 = vld [vmem:[%s181 + $0x20] sm:$0xf]
        %v202 = vld [vmem:[%s181 + $0x24] sm:$0xf]
        %v203 = vld [vmem:[%s181 + $0x28] sm:$0xf]
        %v204 = vld [vmem:[%s181 + $0x2c] sm:$0xf]
        %v205 = vld [vmem:[%s181 + $0x30] sm:$0xf]
        %v206 = vld [vmem:[%s181 + $0x34] sm:$0xf]
        %v207 = vld [vmem:[%s181 + $0x38] sm:$0xf]
        %v208 = vld [vmem:[%s181 + $0x3c] sm:$0xf]
        %v209 = vld [vmem:[%s181 + $0x40] sm:$0xf]
        %v210 = vld [vmem:[%s181 + $0x44] sm:$0xf]
        %v211 = vld [vmem:[%s181 + $0x48] sm:$0xf]
        %v212 = vld [vmem:[%s181 + $0x4c] sm:$0xf]
        %v213 = vld [vmem:[%s181 + $0x50] sm:$0xf]
        %v214 = vld [vmem:[%s181 + $0x54] sm:$0xf]
        %v215 = vld [vmem:[%s181 + $0x58] sm:$0xf]
        %v216 = vld [vmem:[%s181 + $0x5c] sm:$0xf]
        %v217 = vld [vmem:[%s181 + $0x60] sm:$0xf]
        %v218 = vld [vmem:[%s1] sm:$0xf]
        %v219 = vld [vmem:[%s1 + $0x4] sm:$0xf]
        %v220 = vld [vmem:[%s1 + $0x8] sm:$0xf]
        %v221 = vld [vmem:[%s1 + $0xc] sm:$0xf]
        %v222 = vld [vmem:[%s1 + $0x10] sm:$0xf]
        %v223 = vld [vmem:[%s1 + $0x14] sm:$0xf]
        %v224 = vld [vmem:[%s1 + $0x18] sm:$0xf]
        %v225 = vld [vmem:[%s1 + $0x1c] sm:$0xf]
        %v226 = vld [vmem:[%s1 + $0x20] sm:$0xf]
        %v227 = vld [vmem:[%s1 + $0x24] sm:$0xf]
        %v228 = vld [vmem:[%s1 + $0x28] sm:$0xf]
        %v229 = vld [vmem:[%s1 + $0x2c] sm:$0xf]
        %v230 = vld [vmem:[%s1 + $0x30] sm:$0x3]
        %v256 = vunpack.c.l.b16 %v193
        %v257 = vunpack.c.l.b16 %v194
        %v258 = vunpack.c.l.b16 %v195
        %v259 = vunpack.c.l.b16 %v196
        %v260 = vunpack.c.l.b16 %v197
        %v261 = vunpack.c.l.b16 %v198
        %v262 = vunpack.c.l.b16 %v199
        %v263 = vunpack.c.l.b16 %v200
        %v264 = vunpack.c.l.b16 %v201
        %v265 = vunpack.c.l.b16 %v202
        %v266 = vunpack.c.l.b16 %v203
        %v267 = vunpack.c.l.b16 %v204
        %v268 = vunpack.c.l.b16 %v205
        %v269 = vunpack.c.l.b16 %v206
        %v270 = vunpack.c.l.b16 %v207
        %v271 = vunpack.c.l.b16 %v208
        %v272 = vunpack.c.l.b16 %v209
        %v273 = vunpack.c.l.b16 %v210
        %v274 = vunpack.c.l.b16 %v211
        %v275 = vunpack.c.l.b16 %v212
        %v276 = vunpack.c.l.b16 %v213
        %v277 = vunpack.c.l.b16 %v214
        %v278 = vunpack.c.l.b16 %v215
        %v279 = vunpack.c.l.b16 %v216
        %v280 = vunpack.c.l.b16 %v217
        %v281 = vpack.c.b16 %v257, %v256
        %v282 = vpack.c.b16 %v259, %v258
        %v283 = vpack.c.b16 %v261, %v260
        %v284 = vpack.c.b16 %v263, %v262
        %v285 = vpack.c.b16 %v265, %v264
        %v286 = vpack.c.b16 %v267, %v266
        %v287 = vpack.c.b16 %v269, %v268
        %v288 = vpack.c.b16 %v271, %v270
        %v289 = vpack.c.b16 %v273, %v272
        %v290 = vpack.c.b16 %v275, %v274
        %v291 = vpack.c.b16 %v277, %v276
        %v292 = vpack.c.b16 %v279, %v278
        %v293 = vpack.c.b16 %v280, %v280
        %v307 = vunpack.c.l.b16 %v218
        %v308 = vunpack.c.l.b16 %v219
        %v309 = vunpack.c.l.b16 %v220
        %v310 = vunpack.c.l.b16 %v221
        %v311 = vunpack.c.l.b16 %v222
        %v312 = vunpack.c.l.b16 %v223
        %v313 = vunpack.c.l.b16 %v224
        %v314 = vunpack.c.l.b16 %v225
        %v315 = vunpack.c.l.b16 %v226
        %v316 = vunpack.c.l.b16 %v227
        %v317 = vunpack.c.l.b16 %v228
        %v318 = vunpack.c.l.b16 %v229
        %v319 = vunpack.c.l.b16 %v230
        %v320 = vpack.c.b16 %v308, %v307
        %v321 = vpack.c.b16 %v310, %v309
        %v322 = vpack.c.b16 %v312, %v311
        %v323 = vpack.c.b16 %v314, %v313
        %v324 = vpack.c.b16 %v316, %v315
        %v325 = vpack.c.b16 %v318, %v317
        %v326 = vpack.c.b16 %v319, %v319
        %vm333 = vcmask 818176
        %v335 = vsel %vm333, %v281, 0
        %v338 = vsel %vm333, %v282, 0
        %v341 = vsel %vm333, %v283, 0
        %v344 = vsel %vm333, %v284, 0
        %v347 = vsel %vm333, %v285, 0
        %v350 = vsel %vm333, %v286, 0
        %v353 = vsel %vm333, %v287, 0
        %v356 = vsel %vm333, %v288, 0
        %v359 = vsel %vm333, %v289, 0
        %v362 = vsel %vm333, %v290, 0
        %v365 = vsel %vm333, %v291, 0
        %v368 = vsel %vm333, %v292, 0
        %v371 = vsel %vm333, %v293, 0
        %vm373 = vcmask 1041408
        %v375 = vsel %vm373, %v326, 0
        %377 = vmatprep.subr.bf16.mxu0 0
        %378 = vmatpush1.bf16.msra.mxu0 %v320
        %379 = vmatprep.subr.bf16.mxu0 0
        %380 = vmatpush1.bf16.msra.mxu0 %v321
        %381 = vmatprep.subr.bf16.mxu0 0
        %382 = vmatpush1.bf16.msra.mxu0 %v322
        %383 = vmatprep.subr.bf16.mxu0 0
        %384 = vmatpush1.bf16.msra.mxu0 %v323
        %385 = vmatprep.subr.bf16.mxu0 0
        %386 = vmatpush1.bf16.msra.mxu0 %v324
        %387 = vmatprep.subr.bf16.mxu0 0
        %388 = vmatpush1.bf16.msra.mxu0 %v325
        %389 = vmatprep.subr.bf16.mxu0 0
        %390 = vmatpush1.bf16.msra.mxu0 %v375
        %391 = vmatprep.subr.bf16.mxu0 0
        %392 = vmatpush1.bf16.msra.mxu0 0
        %393 = vmatprep.subr.bf16.mxu0 0
        %394 = vmatpush1.bf16.msra.mxu0 0
        %395 = vmatprep.subr.bf16.mxu0 0
        %396 = vmatpush1.bf16.msra.mxu0 0
        %397 = vmatprep.subr.bf16.mxu0 0
        %398 = vmatpush1.bf16.msra.mxu0 0
        %399 = vmatprep.subr.bf16.mxu0 0
        %400 = vmatpush1.bf16.msra.mxu0 0
        %401 = vmatprep.subr.bf16.mxu0 0
        %402 = vmatpush1.bf16.msra.mxu0 0
        %403 = vmatprep.subr.bf16.mxu0 0
        %404 = vmatpush1.bf16.msra.mxu0 0
        %405 = vmatprep.subr.bf16.mxu0 0
        %406 = vmatpush1.bf16.msra.mxu0 0
        %407 = vmatprep.subr.bf16.mxu0 0
        %408 = vmatpush1.bf16.msra.mxu0 0
        %409 = vmatprep.mubr.bf16.mxu0 0
        %410 = vmatmul.mubr.bf16.gmra.mrb[0].mxu0 %v335
        %v411 = vpop.f32.mrb[0].mxu0
        %v412 = vadd.f32 0.0, %v411
        %v413 = vpop.f32.mrb[0].mxu0
        %v414 = vpop.f32.mrb[0].mxu0
        %v415 = vadd.f32 0.0, %v414
        %v416 = vpop.f32.mrb[0].mxu0
        %417 = vmatprep.mubr.bf16.mxu0 0
        %418 = vmatmul.mubr.bf16.gmra.mrb[0].mxu0 %v338
        %v419 = vpop.f32.mrb[0].mxu0
        %v420 = vadd.f32 0.0, %v419
        %v421 = vpop.f32.mrb[0].mxu0
        %v422 = vpop.f32.mrb[0].mxu0
        %v423 = vadd.f32 0.0, %v422
        %v424 = vpop.f32.mrb[0].mxu0
        %425 = vmatprep.mubr.bf16.mxu0 0
        %426 = vmatmul.mubr.bf16.gmra.mrb[0].mxu0 %v341
        %v427 = vpop.f32.mrb[0].mxu0
        %v428 = vadd.f32 0.0, %v427
        %v429 = vpop.f32.mrb[0].mxu0
        %v430 = vpop.f32.mrb[0].mxu0
        %v431 = vadd.f32 0.0, %v430
        %v432 = vpop.f32.mrb[0].mxu0
        %433 = vmatprep.mubr.bf16.mxu0 0
        %434 = vmatmul.mubr.bf16.gmra.mrb[0].mxu0 %v344
        %v435 = vpop.f32.mrb[0].mxu0
        %v436 = vadd.f32 0.0, %v435
        %v437 = vpop.f32.mrb[0].mxu0
        %v438 = vpop.f32.mrb[0].mxu0
        %v439 = vadd.f32 0.0, %v438
        %v440 = vpop.f32.mrb[0].mxu0
        %441 = vmatprep.mubr.bf16.mxu0 0
        %442 = vmatmul.mubr.bf16.gmra.mrb[0].mxu0 %v347
        %v443 = vpop.f32.mrb[0].mxu0
        %v444 = vadd.f32 0.0, %v443
        %v445 = vpop.f32.mrb[0].mxu0
        %v446 = vpop.f32.mrb[0].mxu0
        %v447 = vadd.f32 0.0, %v446
        %v448 = vpop.f32.mrb[0].mxu0
        %449 = vmatprep.mubr.bf16.mxu0 0
        %450 = vmatmul.mubr.bf16.gmra.mrb[0].mxu0 %v350
        %v451 = vpop.f32.mrb[0].mxu0
        %v452 = vadd.f32 0.0, %v451
        %v453 = vpop.f32.mrb[0].mxu0
        %v454 = vpop.f32.mrb[0].mxu0
        %v455 = vadd.f32 0.0, %v454
        %v456 = vpop.f32.mrb[0].mxu0
        %457 = vmatprep.mubr.bf16.mxu0 0
        %458 = vmatmul.mubr.bf16.gmra.mrb[0].mxu0 %v353
        %v459 = vpop.f32.mrb[0].mxu0
        %v460 = vadd.f32 0.0, %v459
        %v461 = vpop.f32.mrb[0].mxu0
        %v462 = vpop.f32.mrb[0].mxu0
        %v463 = vadd.f32 0.0, %v462
        %v464 = vpop.f32.mrb[0].mxu0
        %465 = vmatprep.mubr.bf16.mxu0 0
        %466 = vmatmul.mubr.bf16.gmra.mrb[0].mxu0 %v356
        %v467 = vpop.f32.mrb[0].mxu0
        %v468 = vadd.f32 0.0, %v467
        %v469 = vpop.f32.mrb[0].mxu0
        %v470 = vpop.f32.mrb[0].mxu0
        %v471 = vadd.f32 0.0, %v470
        %v472 = vpop.f32.mrb[0].mxu0
        %473 = vmatprep.mubr.bf16.mxu0 0
        %474 = vmatmul.mubr.bf16.gmra.mrb[0].mxu0 %v359
        %v475 = vpop.f32.mrb[0].mxu0
        %v476 = vadd.f32 0.0, %v475
        %v477 = vpop.f32.mrb[0].mxu0
        %v478 = vpop.f32.mrb[0].mxu0
        %v479 = vadd.f32 0.0, %v478
        %v480 = vpop.f32.mrb[0].mxu0
        %481 = vmatprep.mubr.bf16.mxu0 0
        %482 = vmatmul.mubr.bf16.gmra.mrb[0].mxu0 %v362
        %v483 = vpop.f32.mrb[0].mxu0
        %v484 = vadd.f32 0.0, %v483
        %v485 = vpop.f32.mrb[0].mxu0
        %v486 = vpop.f32.mrb[0].mxu0
        %v487 = vadd.f32 0.0, %v486
        %v488 = vpop.f32.mrb[0].mxu0
        %489 = vmatprep.mubr.bf16.mxu0 0
        %490 = vmatmul.mubr.bf16.gmra.mrb[0].mxu0 %v365
        %v491 = vpop.f32.mrb[0].mxu0
        %v492 = vadd.f32 0.0, %v491
        %v493 = vpop.f32.mrb[0].mxu0
        %v494 = vpop.f32.mrb[0].mxu0
        %v495 = vadd.f32 0.0, %v494
        %v496 = vpop.f32.mrb[0].mxu0
        %497 = vmatprep.mubr.bf16.mxu0 0
        %498 = vmatmul.mubr.bf16.gmra.mrb[0].mxu0 %v368
        %v499 = vpop.f32.mrb[0].mxu0
        %v500 = vadd.f32 0.0, %v499
        %v501 = vpop.f32.mrb[0].mxu0
        %v502 = vpop.f32.mrb[0].mxu0
        %v503 = vadd.f32 0.0, %v502
        %v504 = vpop.f32.mrb[0].mxu0
        %505 = vmatprep.mubr.bf16.mxu0 0
        %506 = vmatmul.mubr.bf16.gmra.mrb[0].mxu0 %v371
        %v507 = vpop.f32.mrb[0].mxu0
        %v508 = vadd.f32 0.0, %v507
        %v509 = vpop.f32.mrb[0].mxu0
        %v510 = vpop.f32.mrb[0].mxu0
        %v511 = vpop.f32.mrb[0].mxu0
        %512 = vdwg.mxu0
        %538 = vrot.lane.b32.xlu0 %v412, 122
        %v539 = vpop.permute.xlu0 %538
        %540 = vrot.lane.b32.xlu0 %v415, 122
        %v541 = vpop.permute.xlu0 %540
        %542 = vrot.lane.b32.xlu0 %v420, 122
        %v543 = vpop.permute.xlu0 %542
        %544 = vrot.lane.b32.xlu0 %v423, 122
        %v545 = vpop.permute.xlu0 %544
        %546 = vrot.lane.b32.xlu0 %v428, 122
        %v547 = vpop.permute.xlu0 %546
        %548 = vrot.lane.b32.xlu0 %v431, 122
        %v549 = vpop.permute.xlu0 %548
        %550 = vrot.lane.b32.xlu0 %v436, 122
        %v551 = vpop.permute.xlu0 %550
        %552 = vrot.lane.b32.xlu0 %v439, 122
        %v553 = vpop.permute.xlu0 %552
        %554 = vrot.lane.b32.xlu0 %v444, 122
        %v555 = vpop.permute.xlu0 %554
        %556 = vrot.lane.b32.xlu0 %v447, 122
        %v557 = vpop.permute.xlu0 %556
        %558 = vrot.lane.b32.xlu0 %v452, 122
        %v559 = vpop.permute.xlu0 %558
        %560 = vrot.lane.b32.xlu0 %v455, 122
        %v561 = vpop.permute.xlu0 %560
        %562 = vrot.lane.b32.xlu0 %v460, 122
        %v563 = vpop.permute.xlu0 %562
        %564 = vrot.lane.b32.xlu0 %v463, 122
        %v565 = vpop.permute.xlu0 %564
        %566 = vrot.lane.b32.xlu0 %v468, 122
        %v567 = vpop.permute.xlu0 %566
        %568 = vrot.lane.b32.xlu0 %v471, 122
        %v569 = vpop.permute.xlu0 %568
        %570 = vrot.lane.b32.xlu0 %v476, 122
        %v571 = vpop.permute.xlu0 %570
        %572 = vrot.lane.b32.xlu0 %v479, 122
        %v573 = vpop.permute.xlu0 %572
        %574 = vrot.lane.b32.xlu0 %v484, 122
        %v575 = vpop.permute.xlu0 %574
        %576 = vrot.lane.b32.xlu0 %v487, 122
        %v577 = vpop.permute.xlu0 %576
        %578 = vrot.lane.b32.xlu0 %v492, 122
        %v579 = vpop.permute.xlu0 %578
        %580 = vrot.lane.b32.xlu0 %v495, 122
        %v581 = vpop.permute.xlu0 %580
        %582 = vrot.lane.b32.xlu0 %v500, 122
        %v583 = vpop.permute.xlu0 %582
        %584 = vrot.lane.b32.xlu0 %v503, 122
        %v585 = vpop.permute.xlu0 %584
        %586 = vrot.lane.b32.xlu0 %v508, 122
        %v587 = vpop.permute.xlu0 %586
        %v613 = vmax.f32 %v412, %v539
        %v614 = vmax.f32 %v415, %v541
        %v615 = vmax.f32 %v420, %v543
        %v616 = vmax.f32 %v423, %v545
        %v617 = vmax.f32 %v428, %v547
        %v618 = vmax.f32 %v431, %v549
        %v619 = vmax.f32 %v436, %v551
        %v620 = vmax.f32 %v439, %v553
        %v621 = vmax.f32 %v444, %v555
        %v622 = vmax.f32 %v447, %v557
        %v623 = vmax.f32 %v452, %v559
        %v624 = vmax.f32 %v455, %v561
        %v625 = vmax.f32 %v460, %v563
        %v626 = vmax.f32 %v463, %v565
        %v627 = vmax.f32 %v468, %v567
        %v628 = vmax.f32 %v471, %v569
        %v629 = vmax.f32 %v476, %v571
        %v630 = vmax.f32 %v479, %v573
        %v631 = vmax.f32 %v484, %v575
        %v632 = vmax.f32 %v487, %v577
        %v633 = vmax.f32 %v492, %v579
        %v634 = vmax.f32 %v495, %v581
        %v635 = vmax.f32 %v500, %v583
        %v636 = vmax.f32 %v503, %v585
        %v637 = vmax.f32 %v508, %v587
        %663 = vrot.lane.b32.xlu0 %v613, 116
        %v664 = vpop.permute.xlu0 %663
        %665 = vrot.lane.b32.xlu0 %v614, 116
        %v666 = vpop.permute.xlu0 %665
        %667 = vrot.lane.b32.xlu0 %v615, 116
        %v668 = vpop.permute.xlu0 %667
        %669 = vrot.lane.b32.xlu0 %v616, 116
        %v670 = vpop.permute.xlu0 %669
        %671 = vrot.lane.b32.xlu0 %v617, 116
        %v672 = vpop.permute.xlu0 %671
        %673 = vrot.lane.b32.xlu0 %v618, 116
        %v674 = vpop.permute.xlu0 %673
        %675 = vrot.lane.b32.xlu0 %v619, 116
        %v676 = vpop.permute.xlu0 %675
        %677 = vrot.lane.b32.xlu0 %v620, 116
        %v678 = vpop.permute.xlu0 %677
        %679 = vrot.lane.b32.xlu0 %v621, 116
        %v680 = vpop.permute.xlu0 %679
        %681 = vrot.lane.b32.xlu0 %v622, 116
        %v682 = vpop.permute.xlu0 %681
        %683 = vrot.lane.b32.xlu0 %v623, 116
        %v684 = vpop.permute.xlu0 %683
        %685 = vrot.lane.b32.xlu0 %v624, 116
        %v686 = vpop.permute.xlu0 %685
        %687 = vrot.lane.b32.xlu0 %v625, 116
        %v688 = vpop.permute.xlu0 %687
        %689 = vrot.lane.b32.xlu0 %v626, 116
        %v690 = vpop.permute.xlu0 %689
        %691 = vrot.lane.b32.xlu0 %v627, 116
        %v692 = vpop.permute.xlu0 %691
        %693 = vrot.lane.b32.xlu0 %v628, 116
        %v694 = vpop.permute.xlu0 %693
        %695 = vrot.lane.b32.xlu0 %v629, 116
        %v696 = vpop.permute.xlu0 %695
        %697 = vrot.lane.b32.xlu0 %v630, 116
        %v698 = vpop.permute.xlu0 %697
        %699 = vrot.lane.b32.xlu0 %v631, 116
        %v700 = vpop.permute.xlu0 %699
        %701 = vrot.lane.b32.xlu0 %v632, 116
        %v702 = vpop.permute.xlu0 %701
        %703 = vrot.lane.b32.xlu0 %v633, 116
        %v704 = vpop.permute.xlu0 %703
        %705 = vrot.lane.b32.xlu0 %v634, 116
        %v706 = vpop.permute.xlu0 %705
        %707 = vrot.lane.b32.xlu0 %v635, 116
        %v708 = vpop.permute.xlu0 %707
        %709 = vrot.lane.b32.xlu0 %v636, 116
        %v710 = vpop.permute.xlu0 %709
        %711 = vrot.lane.b32.xlu0 %v637, 116
        %v712 = vpop.permute.xlu0 %711
        %v738 = vmax.f32 %v613, %v664
        %v739 = vmax.f32 %v614, %v666
        %v740 = vmax.f32 %v615, %v668
        %v741 = vmax.f32 %v616, %v670
        %v742 = vmax.f32 %v617, %v672
        %v743 = vmax.f32 %v618, %v674
        %v744 = vmax.f32 %v619, %v676
        %v745 = vmax.f32 %v620, %v678
        %v746 = vmax.f32 %v621, %v680
        %v747 = vmax.f32 %v622, %v682
        %v748 = vmax.f32 %v623, %v684
        %v749 = vmax.f32 %v624, %v686
        %v750 = vmax.f32 %v625, %v688
        %v751 = vmax.f32 %v626, %v690
        %v752 = vmax.f32 %v627, %v692
        %v753 = vmax.f32 %v628, %v694
        %v754 = vmax.f32 %v629, %v696
        %v755 = vmax.f32 %v630, %v698
        %v756 = vmax.f32 %v631, %v700
        %v757 = vmax.f32 %v632, %v702
        %v758 = vmax.f32 %v633, %v704
        %v759 = vmax.f32 %v634, %v706
        %v760 = vmax.f32 %v635, %v708
        %v761 = vmax.f32 %v636, %v710
        %v762 = vmax.f32 %v637, %v712
        %v763 = vld [vmem:[%s2] sm:$0x1]
        %v765 = vlaneseq
        %v766 = vshrl.u32 %v765, 7
        %v767 = vsub.s32 0, %v766
        %v768 = vrot.slane %v763, %v767
        %v770 = vadd.f32 %v738, %v768
        %v771 = vadd.f32 %v739, %v768
        %v772 = vadd.f32 %v740, %v768
        %v773 = vadd.f32 %v741, %v768
        %v774 = vadd.f32 %v742, %v768
        %v775 = vadd.f32 %v743, %v768
        %v776 = vadd.f32 %v744, %v768
        %v777 = vadd.f32 %v745, %v768
        %v778 = vadd.f32 %v746, %v768
        %v779 = vadd.f32 %v747, %v768
        %v780 = vadd.f32 %v748, %v768
        %v781 = vadd.f32 %v749, %v768
        %v782 = vadd.f32 %v750, %v768
        %v783 = vadd.f32 %v751, %v768
        %v784 = vadd.f32 %v752, %v768
        %v785 = vadd.f32 %v753, %v768
        %v786 = vadd.f32 %v754, %v768
        %v787 = vadd.f32 %v755, %v768
        %v788 = vadd.f32 %v756, %v768
        %v789 = vadd.f32 %v757, %v768
        %v790 = vadd.f32 %v758, %v768
        %v791 = vadd.f32 %v759, %v768
        %v792 = vadd.f32 %v760, %v768
        %v793 = vadd.f32 %v761, %v768
        %v794 = vadd.f32 %v762, %v768
        %v795 = vmax.f32 %v770, 0.0
        %v796 = vmax.f32 %v771, 0.0
        %v797 = vmax.f32 %v772, 0.0
        %v798 = vmax.f32 %v773, 0.0
        %v799 = vmax.f32 %v774, 0.0
        %v800 = vmax.f32 %v775, 0.0
        %v801 = vmax.f32 %v776, 0.0
        %v802 = vmax.f32 %v777, 0.0
        %v803 = vmax.f32 %v778, 0.0
        %v804 = vmax.f32 %v779, 0.0
        %v805 = vmax.f32 %v780, 0.0
        %v806 = vmax.f32 %v781, 0.0
        %v807 = vmax.f32 %v782, 0.0
        %v808 = vmax.f32 %v783, 0.0
        %v809 = vmax.f32 %v784, 0.0
        %v810 = vmax.f32 %v785, 0.0
        %v811 = vmax.f32 %v786, 0.0
        %v812 = vmax.f32 %v787, 0.0
        %v813 = vmax.f32 %v788, 0.0
        %v814 = vmax.f32 %v789, 0.0
        %v815 = vmax.f32 %v790, 0.0
        %v816 = vmax.f32 %v791, 0.0
        %v817 = vmax.f32 %v792, 0.0
        %v818 = vmax.f32 %v793, 0.0
        %v819 = vmax.f32 %v794, 0.0
        %v820 = vpack.c.bf16 %v796, %v795
        %v821 = vpack.c.bf16 %v798, %v797
        %v822 = vpack.c.bf16 %v800, %v799
        %v823 = vpack.c.bf16 %v802, %v801
        %v824 = vpack.c.bf16 %v804, %v803
        %v825 = vpack.c.bf16 %v806, %v805
        %v826 = vpack.c.bf16 %v808, %v807
        %v827 = vpack.c.bf16 %v810, %v809
        %v828 = vpack.c.bf16 %v812, %v811
        %v829 = vpack.c.bf16 %v814, %v813
        %v830 = vpack.c.bf16 %v816, %v815
        %v831 = vpack.c.bf16 %v818, %v817
        %v832 = vpack.c.bf16 %v819, %v819
        %v846 = vunpack.c.l.b16 %v820
        %v847 = vunpack.c.h.b16 %v820
        %v848 = vunpack.c.l.b16 %v821
        %v849 = vunpack.c.h.b16 %v821
        %v850 = vunpack.c.l.b16 %v822
        %v851 = vunpack.c.h.b16 %v822
        %v852 = vunpack.c.l.b16 %v823
        %v853 = vunpack.c.h.b16 %v823
        %v854 = vunpack.c.l.b16 %v824
        %v855 = vunpack.c.h.b16 %v824
        %v856 = vunpack.c.l.b16 %v825
        %v857 = vunpack.c.h.b16 %v825
        %v858 = vunpack.c.l.b16 %v826
        %v859 = vunpack.c.h.b16 %v826
        %v860 = vunpack.c.l.b16 %v827
        %v861 = vunpack.c.h.b16 %v827
        %v862 = vunpack.c.l.b16 %v828
        %v863 = vunpack.c.h.b16 %v828
        %v864 = vunpack.c.l.b16 %v829
        %v865 = vunpack.c.h.b16 %v829
        %v866 = vunpack.c.l.b16 %v830
        %v867 = vunpack.c.h.b16 %v830
        %v868 = vunpack.c.l.b16 %v831
        %v869 = vunpack.c.h.b16 %v831
        %v870 = vunpack.c.l.b16 %v832
        %v871 = vpack.c.b16 %v846, %v846
        %v872 = vpack.c.b16 %v847, %v847
        %v873 = vpack.c.b16 %v848, %v848
        %v874 = vpack.c.b16 %v849, %v849
        %v875 = vpack.c.b16 %v850, %v850
        %v876 = vpack.c.b16 %v851, %v851
        %v877 = vpack.c.b16 %v852, %v852
        %v878 = vpack.c.b16 %v853, %v853
        %v879 = vpack.c.b16 %v854, %v854
        %v880 = vpack.c.b16 %v855, %v855
        %v881 = vpack.c.b16 %v856, %v856
        %v882 = vpack.c.b16 %v857, %v857
        %v883 = vpack.c.b16 %v858, %v858
        %v884 = vpack.c.b16 %v859, %v859
        %v885 = vpack.c.b16 %v860, %v860
        %v886 = vpack.c.b16 %v861, %v861
        %v887 = vpack.c.b16 %v862, %v862
        %v888 = vpack.c.b16 %v863, %v863
        %v889 = vpack.c.b16 %v864, %v864
        %v890 = vpack.c.b16 %v865, %v865
        %v891 = vpack.c.b16 %v866, %v866
        %v892 = vpack.c.b16 %v867, %v867
        %v893 = vpack.c.b16 %v868, %v868
        %v894 = vpack.c.b16 %v869, %v869
        %v895 = vpack.c.b16 %v870, %v870
        %vm921 = vcmask 44032
        %922 = vst.msk [vmem:[%s172] sm:$0xf] %vm921, %v871
        %923 = vst.msk [vmem:[%s172 + $0x4] sm:$0xf] %vm921, %v872
        %924 = vst.msk [vmem:[%s172 + $0x8] sm:$0xf] %vm921, %v873
        %925 = vst.msk [vmem:[%s172 + $0xc] sm:$0xf] %vm921, %v874
        %926 = vst.msk [vmem:[%s172 + $0x10] sm:$0xf] %vm921, %v875
        %927 = vst.msk [vmem:[%s172 + $0x14] sm:$0xf] %vm921, %v876
        %928 = vst.msk [vmem:[%s172 + $0x18] sm:$0xf] %vm921, %v877
        %929 = vst.msk [vmem:[%s172 + $0x1c] sm:$0xf] %vm921, %v878
        %930 = vst.msk [vmem:[%s172 + $0x20] sm:$0xf] %vm921, %v879
        %931 = vst.msk [vmem:[%s172 + $0x24] sm:$0xf] %vm921, %v880
        %932 = vst.msk [vmem:[%s172 + $0x28] sm:$0xf] %vm921, %v881
        %933 = vst.msk [vmem:[%s172 + $0x2c] sm:$0xf] %vm921, %v882
        %934 = vst.msk [vmem:[%s172 + $0x30] sm:$0xf] %vm921, %v883
        %935 = vst.msk [vmem:[%s172 + $0x34] sm:$0xf] %vm921, %v884
        %936 = vst.msk [vmem:[%s172 + $0x38] sm:$0xf] %vm921, %v885
        %937 = vst.msk [vmem:[%s172 + $0x3c] sm:$0xf] %vm921, %v886
        %938 = vst.msk [vmem:[%s172 + $0x40] sm:$0xf] %vm921, %v887
        %939 = vst.msk [vmem:[%s172 + $0x44] sm:$0xf] %vm921, %v888
        %940 = vst.msk [vmem:[%s172 + $0x48] sm:$0xf] %vm921, %v889
        %941 = vst.msk [vmem:[%s172 + $0x4c] sm:$0xf] %vm921, %v890
        %942 = vst.msk [vmem:[%s172 + $0x50] sm:$0xf] %vm921, %v891
        %943 = vst.msk [vmem:[%s172 + $0x54] sm:$0xf] %vm921, %v892
        %944 = vst.msk [vmem:[%s172 + $0x58] sm:$0xf] %vm921, %v893
        %945 = vst.msk [vmem:[%s172 + $0x5c] sm:$0xf] %vm921, %v894
        %946 = vst.msk [vmem:[%s172 + $0x60] sm:$0xf] %vm921, %v895
        %s947 = sand.u32 %s90, 1
        %s948 = sand.u32 %s90, 1
        %s949 = smul.addr %s948, 100
        %s950 = scalar_lea.vmem [#allocation2], %s949
        // Predicated region
        $region33: #{lenet5_forward.3} parent=31 // pred_check
          %p951 = pneg %p100
        $region34: #{lenet5_forward.3} parent=31 // pred_check_branch
          %953 = sbr.rel (%p951) target = $region36
        $region35: #{lenet5_forward.3} parent=31 // pred_region
          %s954 = smul.u32 25, %s14
          %s955 = ssub.s32 49, %s954
          %p956 = scmp.lt.s32.totalorder %s955, 25
          %s957 = scalar_select %p956, %s955, 25
          %s958 = smul.u32 64, %s957
          %p959 = scmp.ne.s32.totalorder 0, %s958
          %s960 = smul.addr %s954, 4
          %s961 = scalar_lea.vmem %s3, %s960
          // Predicated region
          $region37: #{lenet5_forward.3} parent=35 // pred_check
            %p962 = pneg %p959
          $region38: #{lenet5_forward.3} parent=35 // pred_check_branch
            %964 = sbr.rel (%p962) target = $region40
          $region39: #{lenet5_forward.3} parent=35 // pred_region
            // Predicated region
            $region41: #{lenet5_forward.3} parent=39 // pred_check
              _
            $region42: #{lenet5_forward.3} parent=39 // pred_check_branch
              %966 = sbr.rel target = $region44
            $region43: #{lenet5_forward.3} parent=39 // pred_region
              // Predicated region
              $region63: #{lenet5_forward.3} parent=43 // pred_check
                _
              $region64: #{lenet5_forward.3} parent=43 // pred_check_branch
                %1064 = sbr.rel (0) target = $region66
              $region65: #{lenet5_forward.3} parent=43 // pred_region
                %s1066 = sdiv.u32.pop %s957, 25
                %s1067 = srem.u32.pop %s957, 25
                // While loop
                $region67: #{lenet5_forward.3} parent=65 // loop_pre_header
                  _
                $region68: #{lenet5_forward.3} parent=65 // loop_header
                  %s1069 = sphi 0, %s1071
                  %p1070 = scmp.ge.s32.totalorder %s1069, %s1066
                  %s1074 = sphi 0, %s1129
                  %s1075 = sphi %s950, %s1132
                  %s1076 = sphi %s961, %s1133
                $region69: #{lenet5_forward.3} parent=65 // loop_header_branch
                  %1073 = sbr.rel (%p1070) target = $region73
                $region70: #{lenet5_forward.3} parent=65 // loop_body
                  %v1077 = vld [vmem:[%s1075] sm:$0xf]
                  %1078 = vst [vmem:[%s1076] sm:$0xf] %v1077
                  %v1079 = vld [vmem:[%s1075 + $0x4] sm:$0xf]
                  %1080 = vst [vmem:[%s1076 + $0x4] sm:$0xf] %v1079
                  %v1081 = vld [vmem:[%s1075 + $0x8] sm:$0xf]
                  %1082 = vst [vmem:[%s1076 + $0x8] sm:$0xf] %v1081
                  %v1083 = vld [vmem:[%s1075 + $0xc] sm:$0xf]
                  %1084 = vst [vmem:[%s1076 + $0xc] sm:$0xf] %v1083
                  %v1085 = vld [vmem:[%s1075 + $0x10] sm:$0xf]
                  %1086 = vst [vmem:[%s1076 + $0x10] sm:$0xf] %v1085
                  %v1087 = vld [vmem:[%s1075 + $0x14] sm:$0xf]
                  %1088 = vst [vmem:[%s1076 + $0x14] sm:$0xf] %v1087
                  %v1089 = vld [vmem:[%s1075 + $0x18] sm:$0xf]
                  %1090 = vst [vmem:[%s1076 + $0x18] sm:$0xf] %v1089
                  %v1091 = vld [vmem:[%s1075 + $0x1c] sm:$0xf]
                  %1092 = vst [vmem:[%s1076 + $0x1c] sm:$0xf] %v1091
                  %v1093 = vld [vmem:[%s1075 + $0x20] sm:$0xf]
                  %1094 = vst [vmem:[%s1076 + $0x20] sm:$0xf] %v1093
                  %v1095 = vld [vmem:[%s1075 + $0x24] sm:$0xf]
                  %1096 = vst [vmem:[%s1076 + $0x24] sm:$0xf] %v1095
                  %v1097 = vld [vmem:[%s1075 + $0x28] sm:$0xf]
                  %1098 = vst [vmem:[%s1076 + $0x28] sm:$0xf] %v1097
                  %v1099 = vld [vmem:[%s1075 + $0x2c] sm:$0xf]
                  %1100 = vst [vmem:[%s1076 + $0x2c] sm:$0xf] %v1099
                  %v1101 = vld [vmem:[%s1075 + $0x30] sm:$0xf]
                  %1102 = vst [vmem:[%s1076 + $0x30] sm:$0xf] %v1101
                  %v1103 = vld [vmem:[%s1075 + $0x34] sm:$0xf]
                  %1104 = vst [vmem:[%s1076 + $0x34] sm:$0xf] %v1103
                  %v1105 = vld [vmem:[%s1075 + $0x38] sm:$0xf]
                  %1106 = vst [vmem:[%s1076 + $0x38] sm:$0xf] %v1105
                  %v1107 = vld [vmem:[%s1075 + $0x3c] sm:$0xf]
                  %1108 = vst [vmem:[%s1076 + $0x3c] sm:$0xf] %v1107
                  %v1109 = vld [vmem:[%s1075 + $0x40] sm:$0xf]
                  %1110 = vst [vmem:[%s1076 + $0x40] sm:$0xf] %v1109
                  %v1111 = vld [vmem:[%s1075 + $0x44] sm:$0xf]
                  %1112 = vst [vmem:[%s1076 + $0x44] sm:$0xf] %v1111
                  %v1113 = vld [vmem:[%s1075 + $0x48] sm:$0xf]
                  %1114 = vst [vmem:[%s1076 + $0x48] sm:$0xf] %v1113
                  %v1115 = vld [vmem:[%s1075 + $0x4c] sm:$0xf]
                  %1116 = vst [vmem:[%s1076 + $0x4c] sm:$0xf] %v1115
                  %v1117 = vld [vmem:[%s1075 + $0x50] sm:$0xf]
                  %1118 = vst [vmem:[%s1076 + $0x50] sm:$0xf] %v1117
                  %v1119 = vld [vmem:[%s1075 + $0x54] sm:$0xf]
                  %1120 = vst [vmem:[%s1076 + $0x54] sm:$0xf] %v1119
                  %v1121 = vld [vmem:[%s1075 + $0x58] sm:$0xf]
                  %1122 = vst [vmem:[%s1076 + $0x58] sm:$0xf] %v1121
                  %v1123 = vld [vmem:[%s1075 + $0x5c] sm:$0xf]
                  %1124 = vst [vmem:[%s1076 + $0x5c] sm:$0xf] %v1123
                  %v1125 = vld [vmem:[%s1075 + $0x60] sm:$0xf]
                  %1126 = vst [vmem:[%s1076 + $0x60] sm:$0xf] %v1125
                  %s1127 = sadd.s32 1, %s1074
                  %p1128 = scmp.ge.s32.totalorder %s1127, %s1066
                  %s1129 = scalar_select %p1128, 0, %s1127
                  %s1130 = smul.u32 %s1129, 100
                  %s1131 = smul.u32 %s1129, 100
                  %s1132 = scalar_lea.vmem %s950, %s1130 [#allocation2]
                  %s1133 = scalar_lea.vmem %s961, %s1131
                $region71: #{lenet5_forward.3} parent=65 // loop_footer
                  %s1071 = sadd.s32 %s1069, 1
                $region72: #{lenet5_forward.3} parent=65 // loop_footer_branch
                  %1068 = sbr.rel target = $region68
                $region73: #{lenet5_forward.3} parent=65 // loop_exit
                  _
                %s1134 = sdiv.u32.pop %s957, 25
                %s1135 = srem.u32.pop %s957, 25
                %s1136 = smul.u32 %s1134, 25
                %s1137 = smul.u32 4, %s1136
                %s1138 = scalar_lea.vmem %s950, %s1137 [#allocation2]
                %s1139 = smul.u32 4, %s1136
                %s1140 = scalar_lea.vmem %s961, %s1139
                // While loop
                $region74: #{lenet5_forward.3} parent=65 // loop_pre_header
                  _
                $region75: #{lenet5_forward.3} parent=65 // loop_header
                  %s1142 = sphi 0, %s1144
                  %p1143 = scmp.ge.s32.totalorder %s1142, %s1135
                  %s1147 = sphi 0, %s1154
                  %s1148 = sphi %s1138, %s1157
                  %s1149 = sphi %s1140, %s1158
                $region76: #{lenet5_forward.3} parent=65 // loop_header_branch
                  %1146 = sbr.rel (%p1143) target = $region80
                $region77: #{lenet5_forward.3} parent=65 // loop_body
                  %v1150 = vld [vmem:[%s1148] sm:$0xf]
                  %1151 = vst [vmem:[%s1149] sm:$0xf] %v1150
                  %s1152 = sadd.s32 1, %s1147
                  %p1153 = scmp.ge.s32.totalorder %s1152, %s1135
                  %s1154 = scalar_select %p1153, 0, %s1152
                  %s1155 = smul.u32 %s1154, 4
                  %s1156 = smul.u32 %s1154, 4
                  %s1157 = scalar_lea.vmem %s1138, %s1155 [#allocation2]
                  %s1158 = scalar_lea.vmem %s1140, %s1156
                $region78: #{lenet5_forward.3} parent=65 // loop_footer
                  %s1144 = sadd.s32 %s1142, 1
                $region79: #{lenet5_forward.3} parent=65 // loop_footer_branch
                  %1141 = sbr.rel target = $region75
                $region80: #{lenet5_forward.3} parent=65 // loop_exit
                  _
              $region66: #{lenet5_forward.3} parent=43 // pred_fallthru
                _
            $region44: #{lenet5_forward.3} parent=39 // pred_fallthru
              _
            // Predicated region
            $region45: #{lenet5_forward.3} parent=39 // pred_check
              _
            $region46: #{lenet5_forward.3} parent=39 // pred_check_branch
              %968 = sbr.rel (0) target = $region48
            $region47: #{lenet5_forward.3} parent=39 // pred_region
              %s970 = sdiv.u32.pop %s957, 25
              %s971 = srem.u32.pop %s957, 25
              // While loop
              $region49: #{lenet5_forward.3} parent=47 // loop_pre_header
                _
              $region50: #{lenet5_forward.3} parent=47 // loop_header
                %s973 = sphi 0, %s975
                %p974 = scmp.ge.s32.totalorder %s973, %s970
                %s978 = sphi 0, %s1033
                %s979 = sphi %s950, %s1036
                %s980 = sphi %s961, %s1037
              $region51: #{lenet5_forward.3} parent=47 // loop_header_branch
                %977 = sbr.rel (%p974) target = $region55
              $region52: #{lenet5_forward.3} parent=47 // loop_body
                %v981 = vld [vmem:[%s979] sm:$0xf]
                %982 = vst [vmem:[%s980] sm:$0xf] %v981
                %v983 = vld [vmem:[%s979 + $0x4] sm:$0xf]
                %984 = vst [vmem:[%s980 + $0x4] sm:$0xf] %v983
                %v985 = vld [vmem:[%s979 + $0x8] sm:$0xf]
                %986 = vst [vmem:[%s980 + $0x8] sm:$0xf] %v985
                %v987 = vld [vmem:[%s979 + $0xc] sm:$0xf]
                %988 = vst [vmem:[%s980 + $0xc] sm:$0xf] %v987
                %v989 = vld [vmem:[%s979 + $0x10] sm:$0xf]
                %990 = vst [vmem:[%s980 + $0x10] sm:$0xf] %v989
                %v991 = vld [vmem:[%s979 + $0x14] sm:$0xf]
                %992 = vst [vmem:[%s980 + $0x14] sm:$0xf] %v991
                %v993 = vld [vmem:[%s979 + $0x18] sm:$0xf]
                %994 = vst [vmem:[%s980 + $0x18] sm:$0xf] %v993
                %v995 = vld [vmem:[%s979 + $0x1c] sm:$0xf]
                %996 = vst [vmem:[%s980 + $0x1c] sm:$0xf] %v995
                %v997 = vld [vmem:[%s979 + $0x20] sm:$0xf]
                %998 = vst [vmem:[%s980 + $0x20] sm:$0xf] %v997
                %v999 = vld [vmem:[%s979 + $0x24] sm:$0xf]
                %1000 = vst [vmem:[%s980 + $0x24] sm:$0xf] %v999
                %v1001 = vld [vmem:[%s979 + $0x28] sm:$0xf]
                %1002 = vst [vmem:[%s980 + $0x28] sm:$0xf] %v1001
                %v1003 = vld [vmem:[%s979 + $0x2c] sm:$0xf]
                %1004 = vst [vmem:[%s980 + $0x2c] sm:$0xf] %v1003
                %v1005 = vld [vmem:[%s979 + $0x30] sm:$0xf]
                %1006 = vst [vmem:[%s980 + $0x30] sm:$0xf] %v1005
                %v1007 = vld [vmem:[%s979 + $0x34] sm:$0xf]
                %1008 = vst [vmem:[%s980 + $0x34] sm:$0xf] %v1007
                %v1009 = vld [vmem:[%s979 + $0x38] sm:$0xf]
                %1010 = vst [vmem:[%s980 + $0x38] sm:$0xf] %v1009
                %v1011 = vld [vmem:[%s979 + $0x3c] sm:$0xf]
                %1012 = vst [vmem:[%s980 + $0x3c] sm:$0xf] %v1011
                %v1013 = vld [vmem:[%s979 + $0x40] sm:$0xf]
                %1014 = vst [vmem:[%s980 + $0x40] sm:$0xf] %v1013
                %v1015 = vld [vmem:[%s979 + $0x44] sm:$0xf]
                %1016 = vst [vmem:[%s980 + $0x44] sm:$0xf] %v1015
                %v1017 = vld [vmem:[%s979 + $0x48] sm:$0xf]
                %1018 = vst [vmem:[%s980 + $0x48] sm:$0xf] %v1017
                %v1019 = vld [vmem:[%s979 + $0x4c] sm:$0xf]
                %1020 = vst [vmem:[%s980 + $0x4c] sm:$0xf] %v1019
                %v1021 = vld [vmem:[%s979 + $0x50] sm:$0xf]
                %1022 = vst [vmem:[%s980 + $0x50] sm:$0xf] %v1021
                %v1023 = vld [vmem:[%s979 + $0x54] sm:$0xf]
                %1024 = vst [vmem:[%s980 + $0x54] sm:$0xf] %v1023
                %v1025 = vld [vmem:[%s979 + $0x58] sm:$0xf]
                %1026 = vst [vmem:[%s980 + $0x58] sm:$0xf] %v1025
                %v1027 = vld [vmem:[%s979 + $0x5c] sm:$0xf]
                %1028 = vst [vmem:[%s980 + $0x5c] sm:$0xf] %v1027
                %v1029 = vld [vmem:[%s979 + $0x60] sm:$0xf]
                %1030 = vst [vmem:[%s980 + $0x60] sm:$0xf] %v1029
                %s1031 = sadd.s32 1, %s978
                %p1032 = scmp.ge.s32.totalorder %s1031, %s970
                %s1033 = scalar_select %p1032, 0, %s1031
                %s1034 = smul.u32 %s1033, 100
                %s1035 = smul.u32 %s1033, 100
                %s1036 = scalar_lea.vmem %s950, %s1034 [#allocation2]
                %s1037 = scalar_lea.vmem %s961, %s1035
              $region53: #{lenet5_forward.3} parent=47 // loop_footer
                %s975 = sadd.s32 %s973, 1
              $region54: #{lenet5_forward.3} parent=47 // loop_footer_branch
                %972 = sbr.rel target = $region50
              $region55: #{lenet5_forward.3} parent=47 // loop_exit
                _
              %s1038 = sdiv.u32.pop %s957, 25
              %s1039 = srem.u32.pop %s957, 25
              %s1040 = smul.u32 %s1038, 25
              %s1041 = smul.u32 4, %s1040
              %s1042 = scalar_lea.vmem %s950, %s1041 [#allocation2]
              %s1043 = smul.u32 4, %s1040
              %s1044 = scalar_lea.vmem %s961, %s1043
              // While loop
              $region56: #{lenet5_forward.3} parent=47 // loop_pre_header
                _
              $region57: #{lenet5_forward.3} parent=47 // loop_header
                %s1046 = sphi 0, %s1048
                %p1047 = scmp.ge.s32.totalorder %s1046, %s1039
                %s1051 = sphi 0, %s1058
                %s1052 = sphi %s1042, %s1061
                %s1053 = sphi %s1044, %s1062
              $region58: #{lenet5_forward.3} parent=47 // loop_header_branch
                %1050 = sbr.rel (%p1047) target = $region62
              $region59: #{lenet5_forward.3} parent=47 // loop_body
                %v1054 = vld [vmem:[%s1052] sm:$0xf]
                %1055 = vst [vmem:[%s1053] sm:$0xf] %v1054
                %s1056 = sadd.s32 1, %s1051
                %p1057 = scmp.ge.s32.totalorder %s1056, %s1039
                %s1058 = scalar_select %p1057, 0, %s1056
                %s1059 = smul.u32 %s1058, 4
                %s1060 = smul.u32 %s1058, 4
                %s1061 = scalar_lea.vmem %s1042, %s1059 [#allocation2]
                %s1062 = scalar_lea.vmem %s1044, %s1060
              $region60: #{lenet5_forward.3} parent=47 // loop_footer
                %s1048 = sadd.s32 %s1046, 1
              $region61: #{lenet5_forward.3} parent=47 // loop_footer_branch
                %1045 = sbr.rel target = $region57
              $region62: #{lenet5_forward.3} parent=47 // loop_exit
                _
            $region48: #{lenet5_forward.3} parent=39 // pred_fallthru
              _
          $region40: #{lenet5_forward.3} parent=35 // pred_fallthru
            _
          %1159 = vnop
        $region36: #{lenet5_forward.3} parent=31 // pred_fallthru
          _
      $region32: #{lenet5_forward.3} parent=5 // pred_fallthru
        _
      %p1160 = scmp.le.s32.totalorder 2, %s9
      // Predicated region
      $region81: #{lenet5_forward.3} parent=5 // pred_check
        %p1161 = pneg %p1160
      $region82: #{lenet5_forward.3} parent=5 // pred_check_branch
        %1163 = sbr.rel (%p1161) target = $region84
      $region83: #{lenet5_forward.3} parent=5 // pred_region
        %s1164 = ssub.s32 %s9, 2
        // Predicated region
        $region85: #{lenet5_forward.3} parent=83 // pred_check
          %p1165 = pneg %p106
        $region86: #{lenet5_forward.3} parent=83 // pred_check_branch
          %1167 = sbr.rel (%p1165) target = $region88
        $region87: #{lenet5_forward.3} parent=83 // pred_region
          %s1168 = sand.u32 %s91, 1
          %s1169 = sand.u32 %s91, 1
          %s1170 = smul.addr %s1169, 100
          %s1171 = scalar_lea.vmem [#allocation2], %s1170
        $region88: #{lenet5_forward.3} parent=83 // pred_fallthru
          _
      $region84: #{lenet5_forward.3} parent=5 // pred_fallthru
        _
    $region6: #{lenet5_forward.3} parent=1 // loop_footer
      %s13 = sadd.s32 1, %s9
    $region7: #{lenet5_forward.3} parent=1 // loop_footer_branch
      %8 = sbr.rel target = $region3
    $region8: #{lenet5_forward.3} parent=1 // loop_exit
      _

// kernel: lenet5_forward.4
$region0: #{lenet5_forward.4}
  #allocation0 [shape = 'u32[]', space=smem, size = 0x4, offset = 0x4, fixed_abs, tag = 'smem constant byte address 0x4 - core index']
  #allocation1 [shape = 'u32[144,128]{1,0:T(1,128)}', space=vmem, size = 0x12000, scoped, tag = 'internal scratch']
  %s0 = inlined_call_operand.vmem [shape: bf16[50,600], index: 0, kind: input, shape index: {}]
  %s1 = inlined_call_operand.vmem [shape: bf16[600,64], index: 1, kind: input, shape index: {}]
  %s2 = inlined_call_operand.vmem [shape: f32[1,16], index: 2, kind: input, shape index: {}]
  %s3 = inlined_call_operand.vmem [shape: bf16[50,16], index: 3, kind: output, shape index: {}]
  %s4 = sld [smem:[#allocation0]]
  $region89: #{lenet5_forward.4} parent=0
    _
  %s6 = ssub.s32 1, %s4
  %s7 = scalar_select 0, %s6, %s4
  $region1: #{lenet5_forward.4} parent=0
    #allocation2 [shape = 'u8[16384]{0}', space=vmem, size = 0x4000, scoped, tag = 'output window, operand 0']
    loop: start=0, step=1, limit=4
    $region2: #{lenet5_forward.4} parent=1 // loop_pre_header
      _
    $region3: #{lenet5_forward.4} parent=1 // loop_header
      %s9 = sphi 0, %s13
      %p10 = scmp.ge.s32.totalorder %s9, 4
      %s19 = sphi 0, %s21
      %s22 = sphi 0, %s19
      %s23 = sphi 0, %s22
      %s39 = sphi 0, %s23
      %s43 = sphi 0, %s43
      %s45 = sphi 0, %s43
      %s46 = sphi 0, %s45
      %s60 = sphi 0, %s46
      %s64 = sphi 0, %s64
      %s66 = sphi 0, %s64
      %s67 = sphi 0, %s66
      %s81 = sphi 0, %s67
      %s87 = sphi 0, %s89
      %s90 = sphi 0, %s87
      %s91 = sphi 0, %s90
      %s107 = sphi 0, %s91
    $region4: #{lenet5_forward.4} parent=1 // loop_header_branch
      %12 = sbr.rel (%p10) target = $region8
    $region5: #{lenet5_forward.4} parent=1 // loop_body
      %s14 = ssub.s32 %s9, 1
      %s15 = ssub.s32 %s9, 2
      %s16 = sadd.s32 %s9, 1
      %s17 = ssub.s32 %s9, %s16
      %p18 = scmp.eq.s32.totalorder %s17, 0
      %s20 = sadd.s32 %s19, 1
      %s21 = scalar_select %p18, %s19, %s20
      %p24 = pneg %p18
      %p25 = scmp.eq.s32.totalorder %s9, 1
      %p26 = por %p24, %p25
      %p27 = scmp.ne.s32.totalorder %s19, %s22
      %p28 = scmp.eq.s32.totalorder %s9, 0
      %p29 = por %p27, %p28
      %p30 = scmp.ne.s32.totalorder %s19, %s22
      %p31 = scmp.eq.s32.totalorder %s14, 1
      %p32 = por %p30, %p31
      %p33 = scmp.ne.s32.totalorder %s22, %s23
      %p34 = scmp.eq.s32.totalorder %s14, 0
      %p35 = por %p33, %p34
      %p36 = scmp.ne.s32.totalorder %s22, %s23
      %p37 = scmp.eq.s32.totalorder %s15, 1
      %p38 = por %p36, %p37
      %p40 = scmp.ne.s32.totalorder %s23, %s39
      %p41 = scmp.eq.s32.totalorder %s15, 0
      %p42 = por %p40, %p41
      %s44 = sadd.s32 %s43, 1
      %p47 = scmp.eq.s32.totalorder %s9, 1
      %p48 = scmp.ne.s32.totalorder %s43, %s45
      %p49 = scmp.eq.s32.totalorder %s9, 0
      %p50 = por %p48, %p49
      %p51 = scmp.ne.s32.totalorder %s43, %s45
      %p52 = scmp.eq.s32.totalorder %s14, 1
      %p53 = por %p51, %p52
      %p54 = scmp.ne.s32.totalorder %s45, %s46
      %p55 = scmp.eq.s32.totalorder %s14, 0
      %p56 = por %p54, %p55
      %p57 = scmp.ne.s32.totalorder %s45, %s46
      %p58 = scmp.eq.s32.totalorder %s15, 1
      %p59 = por %p57, %p58
      %p61 = scmp.ne.s32.totalorder %s46, %s60
      %p62 = scmp.eq.s32.totalorder %s15, 0
      %p63 = por %p61, %p62
      %s65 = sadd.s32 %s64, 1
      %p68 = scmp.eq.s32.totalorder %s9, 1
      %p69 = scmp.ne.s32.totalorder %s64, %s66
      %p70 = scmp.eq.s32.totalorder %s9, 0
      %p71 = por %p69, %p70
      %p72 = scmp.ne.s32.totalorder %s64, %s66
      %p73 = scmp.eq.s32.totalorder %s14, 1
      %p74 = por %p72, %p73
      %p75 = scmp.ne.s32.totalorder %s66, %s67
      %p76 = scmp.eq.s32.totalorder %s14, 0
      %p77 = por %p75, %p76
      %p78 = scmp.ne.s32.totalorder %s66, %s67
      %p79 = scmp.eq.s32.totalorder %s15, 1
      %p80 = por %p78, %p79
      %p82 = scmp.ne.s32.totalorder %s67, %s81
      %p83 = scmp.eq.s32.totalorder %s15, 0
      %p84 = por %p82, %p83
      %s85 = ssub.s32 %s9, %s16
      %p86 = scmp.eq.s32.totalorder %s85, 0
      %s88 = sadd.s32 %s87, 1
      %s89 = scalar_select %p86, %s87, %s88
      %p92 = pneg %p86
      %p93 = scmp.eq.s32.totalorder %s9, 1
      %p94 = por %p92, %p93
      %p95 = scmp.ne.s32.totalorder %s87, %s90
      %p96 = scmp.eq.s32.totalorder %s9, 0
      %p97 = por %p95, %p96
      %p98 = scmp.ne.s32.totalorder %s87, %s90
      %p99 = scmp.eq.s32.totalorder %s14, 1
      %p100 = por %p98, %p99
      %p101 = scmp.ne.s32.totalorder %s90, %s91
      %p102 = scmp.eq.s32.totalorder %s14, 0
      %p103 = por %p101, %p102
      %p104 = scmp.ne.s32.totalorder %s90, %s91
      %p105 = scmp.eq.s32.totalorder %s15, 1
      %p106 = por %p104, %p105
      %p108 = scmp.ne.s32.totalorder %s91, %s107
      %p109 = scmp.eq.s32.totalorder %s15, 0
      %p110 = por %p108, %p109
      %p111 = scmp.le.s32.totalorder 1, %s9
      %p112 = scmp.lt.s32.totalorder %s9, 3
      %p113 = pnand %p111, %p112
      %p114 = pneg %p113
      // Predicated region
      $region9: #{lenet5_forward.4} parent=5 // pred_check
        _
      $region10: #{lenet5_forward.4} parent=5 // pred_check_branch
        %116 = sbr.rel (%p113) target = $region12
      $region11: #{lenet5_forward.4} parent=5 // pred_region
        %s117 = ssub.s32 %s9, 1
        // Predicated region
        $region13: #{lenet5_forward.4} parent=11 // pred_check
          %p118 = pneg %p56
        $region14: #{lenet5_forward.4} parent=11 // pred_check_branch
          %120 = sbr.rel (%p118) target = $region16
        $region15: #{lenet5_forward.4} parent=11 // pred_region
          _
        $region16: #{lenet5_forward.4} parent=11 // pred_fallthru
          _
        // Predicated region
        $region17: #{lenet5_forward.4} parent=11 // pred_check
          %p121 = pneg %p77
        $region18: #{lenet5_forward.4} parent=11 // pred_check_branch
          %123 = sbr.rel (%p121) target = $region20
        $region19: #{lenet5_forward.4} parent=11 // pred_region
          _
        $region20: #{lenet5_forward.4} parent=11 // pred_fallthru
          _
      $region12: #{lenet5_forward.4} parent=5 // pred_fallthru
        _
      %p124 = scmp.lt.s32.totalorder %s9, 2
      // Predicated region
      $region21: #{lenet5_forward.4} parent=5 // pred_check
        %p125 = pneg %p124
      $region22: #{lenet5_forward.4} parent=5 // pred_check_branch
        %127 = sbr.rel (%p125) target = $region24
      $region23: #{lenet5_forward.4} parent=5 // pred_region
        // Predicated region
        $region25: #{lenet5_forward.4} parent=23 // pred_check
          %p128 = pneg %p29
        $region26: #{lenet5_forward.4} parent=23 // pred_check_branch
          %130 = sbr.rel (%p128) target = $region28
        $region27: #{lenet5_forward.4} parent=23 // pred_region
          %s131 = smul.u32 4, %s9
          %s132 = ssub.s32 7, %s131
          %p133 = scmp.lt.s32.totalorder %s132, 4
          %s134 = scalar_select %p133, %s132, 4
          %s135 = smul.u32 64, %s134
          %s136 = smul.u32 %s135, 5
          %p137 = scmp.lt.s32.totalorder %s131, 6
          %s138 = scalar_select %p137, %s131, 6
          %s139 = smul.addr %s138, 5
          %s140 = smul.addr %s139, 4
          %s141 = scalar_lea.vmem %s0, %s140
          %s142 = smul.u32 4, %s9
          %s143 = ssub.s32 7, %s142
          %p144 = scmp.lt.s32.totalorder %s143, 4
          %s145 = scalar_select %p144, %s143, 4
          %s146 = smul.u32 64, %s145
          %s147 = smul.u32 %s146, 5
        $region28: #{lenet5_forward.4} parent=23 // pred_fallthru
          _
      $region24: #{lenet5_forward.4} parent=5 // pred_fallthru
        _
      %p148 = scmp.le.s32.totalorder 1, %s9
      %p149 = scmp.lt.s32.totalorder %s9, 3
      %p150 = pnand %p148, %p149
      %p151 = pneg %p150
      // Predicated region
      $region29: #{lenet5_forward.4} parent=5 // pred_check
        _
      $region30: #{lenet5_forward.4} parent=5 // pred_check_branch
        %153 = sbr.rel (%p150) target = $region32
      $region31: #{lenet5_forward.4} parent=5 // pred_region
        %s154 = ssub.s32 %s9, 1
        %s155 = smul.u32 4, %s14
        %s156 = ssub.s32 7, %s155
        %p157 = scmp.lt.s32.totalorder %s156, 4
        %s158 = scalar_select %p157, %s156, 4
        %s159 = smul.u32 64, %s158
        %s160 = smul.u32 %s159, 5
        %p161 = scmp.lt.s32.totalorder %s155, 6
        %s162 = scalar_select %p161, %s155, 6
        %s163 = smul.addr %s162, 5
        %s164 = smul.addr %s163, 4
        %s165 = scalar_lea.vmem %s0, %s164
        %p166 = pneg %p35
        %p167 = pneg %p32
        %p168 = pneg %p56
        %p169 = pneg %p53
        %p170 = pneg %p77
        %p171 = pneg %p74
        %p172 = pneg %p103
        %p173 = pneg %p100
        %s174 = sand.u32 %s90, 1
        %s175 = sand.u32 %s90, 1
        %s176 = smul.addr %s175, 16
        %s177 = scalar_lea.vmem [#allocation2], %s176
        %s178 = smul.u32 4, %s14
        %s179 = ssub.s32 7, %s178
        %p180 = scmp.lt.s32.totalorder %s179, 4
        %s181 = scalar_select %p180, %s179, 4
        %s182 = smul.u32 64, %s181
        %s183 = smul.u32 %s182, 5
        %p184 = scmp.lt.s32.totalorder %s178, 6
        %s185 = scalar_select %p184, %s178, 6
        %s186 = smul.addr %s185, 5
        %s187 = smul.addr %s186, 4
        %s188 = scalar_lea.vmem %s0, %s187
        %s189 = smul.u32 4, %s14
        %s190 = ssub.s32 7, %s189
        %p191 = scmp.lt.s32.totalorder %s190, 4
        %s192 = scalar_select %p191, %s190, 4
        %s193 = smul.u32 64, %s192
        %s194 = smul.u32 %s193, 5
        %s195 = smul.u32 4, %s14
        %s196 = ssub.s32 7, %s195
        %p197 = scmp.lt.s32.totalorder %s196, 4
        %s198 = scalar_select %p197, %s196, 4
        %s199 = smul.u32 64, %s198
        %v201 = vld [vmem:[%s188] sm:$0xff]
        %v202 = vld [vmem:[%s188 + $0x8] sm:$0xff]
        %v203 = vld [vmem:[%s188 + $0x10] sm:$0xf]
        %v204 = vld [vmem:[%s188 + $0x14] sm:$0xff]
        %v205 = vld [vmem:[%s188 + $0x1c] sm:$0xff]
        %v206 = vld [vmem:[%s188 + $0x24] sm:$0xf]
        %v207 = vld [vmem:[%s188 + $0x28] sm:$0xff]
        %v208 = vld [vmem:[%s188 + $0x30] sm:$0xff]
        %v209 = vld [vmem:[%s188 + $0x38] sm:$0xf]
        %v210 = vld [vmem:[%s188 + $0x3c] sm:$0xff]
        %v211 = vld [vmem:[%s188 + $0x44] sm:$0xff]
        %v212 = vld [vmem:[%s188 + $0x4c] sm:$0xf]
        %v213 = vld [vmem:[%s1] sm:$0xf]
        %v214 = vld [vmem:[%s1 + $0x4] sm:$0xf]
        %v215 = vld [vmem:[%s1 + $0x8] sm:$0xf]
        %v216 = vld [vmem:[%s1 + $0xc] sm:$0xf]
        %v217 = vld [vmem:[%s1 + $0x10] sm:$0xf]
        %v218 = vld [vmem:[%s1 + $0x14] sm:$0xf]
        %v219 = vld [vmem:[%s1 + $0x18] sm:$0xf]
        %v220 = vld [vmem:[%s1 + $0x1c] sm:$0xf]
        %v221 = vld [vmem:[%s1 + $0x20] sm:$0xf]
        %v222 = vld [vmem:[%s1 + $0x24] sm:$0xf]
        %v223 = vld [vmem:[%s1 + $0x28] sm:$0xf]
        %v224 = vld [vmem:[%s1 + $0x2c] sm:$0xf]
        %v225 = vld [vmem:[%s1 + $0x30] sm:$0xf]
        %v226 = vld [vmem:[%s1 + $0x34] sm:$0xf]
        %v227 = vld [vmem:[%s1 + $0x38] sm:$0xf]
        %v228 = vld [vmem:[%s1 + $0x3c] sm:$0xf]
        %v229 = vld [vmem:[%s1 + $0x40] sm:$0xf]
        %v230 = vld [vmem:[%s1 + $0x44] sm:$0xf]
        %v231 = vld [vmem:[%s1 + $0x48] sm:$0xf]
        %v232 = vld [vmem:[%s1 + $0x4c] sm:$0xf]
        %v233 = vld [vmem:[%s1 + $0x50] sm:$0xf]
        %v234 = vld [vmem:[%s1 + $0x54] sm:$0xf]
        %v235 = vld [vmem:[%s1 + $0x58] sm:$0xf]
        %v236 = vld [vmem:[%s1 + $0x5c] sm:$0xf]
        %v237 = vld [vmem:[%s1 + $0x60] sm:$0xf]
        %v238 = vld [vmem:[%s1 + $0x64] sm:$0xf]
        %v239 = vld [vmem:[%s1 + $0x68] sm:$0xf]
        %v240 = vld [vmem:[%s1 + $0x6c] sm:$0xf]
        %v241 = vld [vmem:[%s1 + $0x70] sm:$0xf]
        %v242 = vld [vmem:[%s1 + $0x74] sm:$0xf]
        %v243 = vld [vmem:[%s1 + $0x78] sm:$0xf]
        %v244 = vld [vmem:[%s1 + $0x7c] sm:$0xf]
        %v245 = vld [vmem:[%s1 + $0x80] sm:$0xf]
        %v246 = vld [vmem:[%s1 + $0x84] sm:$0xf]
        %v247 = vld [vmem:[%s1 + $0x88] sm:$0xf]
        %v248 = vld [vmem:[%s1 + $0x8c] sm:$0xf]
        %v249 = vld [vmem:[%s1 + $0x90] sm:$0xf]
        %v250 = vld [vmem:[%s1 + $0x94] sm:$0xf]
        %v251 = vld [vmem:[%s1 + $0x98] sm:$0xf]
        %v252 = vld [vmem:[%s1 + $0x9c] sm:$0xf]
        %v253 = vld [vmem:[%s1 + $0xa0] sm:$0xf]
        %v254 = vld [vmem:[%s1 + $0xa4] sm:$0xf]
        %v255 = vld [vmem:[%s1 + $0xa8] sm:$0xf]
        %v256 = vld [vmem:[%s1 + $0xac] sm:$0xf]
        %v257 = vld [vmem:[%s1 + $0xb0] sm:$0xf]
        %v258 = vld [vmem:[%s1 + $0xb4] sm:$0xf]
        %v259 = vld [vmem:[%s1 + $0xb8] sm:$0xf]
        %v260 = vld [vmem:[%s1 + $0xbc] sm:$0xf]
        %v261 = vld [vmem:[%s1 + $0xc0] sm:$0xf]
        %v262 = vld [vmem:[%s1 + $0xc4] sm:$0xf]
        %v263 = vld [vmem:[%s1 + $0xc8] sm:$0xf]
        %v264 = vld [vmem:[%s1 + $0xcc] sm:$0xf]
        %v265 = vld [vmem:[%s1 + $0xd0] sm:$0xf]
        %v266 = vld [vmem:[%s1 + $0xd4] sm:$0xf]
        %v267 = vld [vmem:[%s1 + $0xd8] sm:$0xf]
        %v268 = vld [vmem:[%s1 + $0xdc] sm:$0xf]
        %v269 = vld [vmem:[%s1 + $0xe0] sm:$0xf]
        %v270 = vld [vmem:[%s1 + $0xe4] sm:$0xf]
        %v271 = vld [vmem:[%s1 + $0xe8] sm:$0xf]
        %v272 = vld [vmem:[%s1 + $0xec] sm:$0xf]
        %v273 = vld [vmem:[%s1 + $0xf0] sm:$0xf]
        %v274 = vld [vmem:[%s1 + $0xf4] sm:$0xf]
        %v275 = vld [vmem:[%s1 + $0xf8] sm:$0xf]
        %v276 = vld [vmem:[%s1 + $0xfc] sm:$0xf]
        %v277 = vld [vmem:[%s1 + $0x100] sm:$0xf]
        %v278 = vld [vmem:[%s1 + $0x104] sm:$0xf]
        %v279 = vld [vmem:[%s1 + $0x108] sm:$0xf]
        %v280 = vld [vmem:[%s1 + $0x10c] sm:$0xf]
        %v281 = vld [vmem:[%s1 + $0x110] sm:$0xf]
        %v282 = vld [vmem:[%s1 + $0x114] sm:$0xf]
        %v283 = vld [vmem:[%s1 + $0x118] sm:$0xf]
        %v284 = vld [vmem:[%s1 + $0x11c] sm:$0xf]
        %v285 = vld [vmem:[%s1 + $0x120] sm:$0xf]
        %v286 = vld [vmem:[%s1 + $0x124] sm:$0xf]
        %v287 = vld [vmem:[%s1 + $0x128] sm:$0xf]
        %v300 = vunpack.c.l.b16 %v201
        %v301 = vunpack.c.h.b16 %v201
        %v302 = vunpack.c.l.b16 %v202
        %v303 = vunpack.c.h.b16 %v202
        %v304 = vunpack.c.l.b16 %v203
        %v305 = vunpack.c.l.b16 %v204
        %v306 = vunpack.c.h.b16 %v204
        %v307 = vunpack.c.l.b16 %v205
        %v308 = vunpack.c.h.b16 %v205
        %v309 = vunpack.c.l.b16 %v206
        %v310 = vunpack.c.l.b16 %v207
        %v311 = vunpack.c.h.b16 %v207
        %v312 = vunpack.c.l.b16 %v208
        %v313 = vunpack.c.h.b16 %v208
        %v314 = vunpack.c.l.b16 %v209
        %v315 = vunpack.c.l.b16 %v210
        %v316 = vunpack.c.h.b16 %v210
        %v317 = vunpack.c.l.b16 %v211
        %v318 = vunpack.c.h.b16 %v211
        %v319 = vunpack.c.l.b16 %v212
        %v320 = vpack.c.b16 %v305, %v300
        %v321 = vpack.c.b16 %v306, %v301
        %v322 = vpack.c.b16 %v307, %v302
        %v323 = vpack.c.b16 %v308, %v303
        %v324 = vpack.c.b16 %v309, %v304
        %v325 = vpack.c.b16 %v315, %v310
        %v326 = vpack.c.b16 %v316, %v311
        %v327 = vpack.c.b16 %v317, %v312
        %v328 = vpack.c.b16 %v318, %v313
        %v329 = vpack.c.b16 %v319, %v314
        %v413 = vunpack.c.l.b16 %v213
        %v414 = vunpack.c.l.b16 %v214
        %v415 = vunpack.c.l.b16 %v215
        %v416 = vunpack.c.l.b16 %v216
        %v417 = vunpack.c.l.b16 %v217
        %v418 = vunpack.c.l.b16 %v218
        %v419 = vunpack.c.l.b16 %v219
        %v420 = vunpack.c.l.b16 %v220
        %v421 = vunpack.c.l.b16 %v221
        %v422 = vunpack.c.l.b16 %v222
        %v423 = vunpack.c.l.b16 %v223
        %v424 = vunpack.c.l.b16 %v224
        %v425 = vunpack.c.l.b16 %v225
        %v426 = vunpack.c.l.b16 %v226
        %v427 = vunpack.c.l.b16 %v227
        %v428 = vunpack.c.l.b16 %v228
        %v429 = vunpack.c.l.b16 %v229
        %v430 = vunpack.c.l.b16 %v230
        %v431 = vunpack.c.l.b16 %v231
        %v432 = vunpack.c.l.b16 %v232
        %v433 = vunpack.c.l.b16 %v233
        %v434 = vunpack.c.l.b16 %v234
        %v435 = vunpack.c.l.b16 %v235
        %v436 = vunpack.c.l.b16 %v236
        %v437 = vunpack.c.l.b16 %v237
        %v438 = vunpack.c.l.b16 %v238
        %v439 = vunpack.c.l.b16 %v239
        %v440 = vunpack.c.l.b16 %v240
        %v441 = vunpack.c.l.b16 %v241
        %v442 = vunpack.c.l.b16 %v242
        %v443 = vunpack.c.l.b16 %v243
        %v444 = vunpack.c.l.b16 %v244
        %v445 = vunpack.c.l.b16 %v245
        %v446 = vunpack.c.l.b16 %v246
        %v447 = vunpack.c.l.b16 %v247
        %v448 = vunpack.c.l.b16 %v248
        %v449 = vunpack.c.l.b16 %v249
        %v450 = vunpack.c.l.b16 %v250
        %v451 = vunpack.c.l.b16 %v251
        %v452 = vunpack.c.l.b16 %v252
        %v453 = vunpack.c.l.b16 %v253
        %v454 = vunpack.c.l.b16 %v254
        %v455 = vunpack.c.l.b16 %v255
        %v456 = vunpack.c.l.b16 %v256
        %v457 = vunpack.c.l.b16 %v257
        %v458 = vunpack.c.l.b16 %v258
        %v459 = vunpack.c.l.b16 %v259
        %v460 = vunpack.c.l.b16 %v260
        %v461 = vunpack.c.l.b16 %v261
        %v462 = vunpack.c.l.b16 %v262
        %v463 = vunpack.c.l.b16 %v263
        %v464 = vunpack.c.l.b16 %v264
        %v465 = vunpack.c.l.b16 %v265
        %v466 = vunpack.c.l.b16 %v266
        %v467 = vunpack.c.l.b16 %v267
        %v468 = vunpack.c.l.b16 %v268
        %v469 = vunpack.c.l.b16 %v269
        %v470 = vunpack.c.l.b16 %v270
        %v471 = vunpack.c.l.b16 %v271
        %v472 = vunpack.c.l.b16 %v272
        %v473 = vunpack.c.l.b16 %v273
        %v474 = vunpack.c.l.b16 %v274
        %v475 = vunpack.c.l.b16 %v275
        %v476 = vunpack.c.l.b16 %v276
        %v477 = vunpack.c.l.b16 %v277
        %v478 = vunpack.c.l.b16 %v278
        %v479 = vunpack.c.l.b16 %v279
        %v480 = vunpack.c.l.b16 %v280
        %v481 = vunpack.c.l.b16 %v281
        %v482 = vunpack.c.l.b16 %v282
        %v483 = vunpack.c.l.b16 %v283
        %v484 = vunpack.c.l.b16 %v284
        %v485 = vunpack.c.l.b16 %v285
        %v486 = vunpack.c.l.b16 %v286
        %v487 = vunpack.c.l.b16 %v287
        %v488 = vpack.c.b16 %v414, %v413
        %v489 = vpack.c.b16 %v416, %v415
        %v490 = vpack.c.b16 %v418, %v417
        %v491 = vpack.c.b16 %v420, %v419
        %v492 = vpack.c.b16 %v422, %v421
        %v493 = vpack.c.b16 %v424, %v423
        %v494 = vpack.c.b16 %v426, %v425
        %v495 = vpack.c.b16 %v428, %v427
        %v496 = vpack.c.b16 %v430, %v429
        %v497 = vpack.c.b16 %v432, %v431
        %v498 = vpack.c.b16 %v434, %v433
        %v499 = vpack.c.b16 %v436, %v435
        %v500 = vpack.c.b16 %v438, %v437
        %v501 = vpack.c.b16 %v440, %v439
        %v502 = vpack.c.b16 %v442, %v441
        %v503 = vpack.c.b16 %v444, %v443
        %v504 = vpack.c.b16 %v446, %v445
        %v505 = vpack.c.b16 %v448, %v447
        %v506 = vpack.c.b16 %v450, %v449
        %v507 = vpack.c.b16 %v452, %v451
        %v508 = vpack.c.b16 %v454, %v453
        %v509 = vpack.c.b16 %v456, %v455
        %v510 = vpack.c.b16 %v458, %v457
        %v511 = vpack.c.b16 %v460, %v459
        %v512 = vpack.c.b16 %v462, %v461
        %v513 = vpack.c.b16 %v464, %v463
        %v514 = vpack.c.b16 %v466, %v465
        %v515 = vpack.c.b16 %v468, %v467
        %v516 = vpack.c.b16 %v470, %v469
        %v517 = vpack.c.b16 %v472, %v471
        %v518 = vpack.c.b16 %v474, %v473
        %v519 = vpack.c.b16 %v476, %v475
        %v520 = vpack.c.b16 %v478, %v477
        %v521 = vpack.c.b16 %v480, %v479
        %v522 = vpack.c.b16 %v482, %v481
        %v523 = vpack.c.b16 %v484, %v483
        %v524 = vpack.c.b16 %v486, %v485
        %v525 = vpack.c.b16 %v487, %v487
        %vm563 = vcmask 719872
        %v565 = vsel %vm563, %v324, 0
        %v568 = vsel %vm563, %v329, 0
        %vm570 = vcmask 1043456
        %v572 = vsel %vm570, %v525, 0
        %574 = vmatprep.subr.bf16.mxu0 0
        %575 = vmatpush1.bf16.msra.mxu0 %v488
        %576 = vmatprep.subr.bf16.mxu0 0
        %577 = vmatpush1.bf16.msra.mxu0 %v489
        %578 = vmatprep.subr.bf16.mxu0 0
        %579 = vmatpush1.bf16.msra.mxu0 %v490
        %580 = vmatprep.subr.bf16.mxu0 0
        %581 = vmatpush1.bf16.msra.mxu0 %v491
        %582 = vmatprep.subr.bf16.mxu0 0
        %583 = vmatpush1.bf16.msra.mxu0 %v492
        %584 = vmatprep.subr.bf16.mxu0 0
        %585 = vmatpush1.bf16.msra.mxu0 %v493
        %586 = vmatprep.subr.bf16.mxu0 0
        %587 = vmatpush1.bf16.msra.mxu0 %v494
        %588 = vmatprep.subr.bf16.mxu0 0
        %589 = vmatpush1.bf16.msra.mxu0 %v495
        %590 = vmatprep.subr.bf16.mxu0 0
        %591 = vmatpush1.bf16.msra.mxu0 %v496
        %592 = vmatprep.subr.bf16.mxu0 0
        %593 = vmatpush1.bf16.msra.mxu0 %v497
        %594 = vmatprep.subr.bf16.mxu0 0
        %595 = vmatpush1.bf16.msra.mxu0 %v498
        %596 = vmatprep.subr.bf16.mxu0 0
        %597 = vmatpush1.bf16.msra.mxu0 %v499
        %598 = vmatprep.subr.bf16.mxu0 0
        %599 = vmatpush1.bf16.msra.mxu0 %v500
        %600 = vmatprep.subr.bf16.mxu0 0
        %601 = vmatpush1.bf16.msra.mxu0 %v501
        %602 = vmatprep.subr.bf16.mxu0 0
        %603 = vmatpush1.bf16.msra.mxu0 %v502
        %604 = vmatprep.subr.bf16.mxu0 0
        %605 = vmatpush1.bf16.msra.mxu0 %v503
        %606 = vmatprep.mubr.bf16.mxu0 %v321
        %607 = vmatmul.mubr.bf16.gmra.mrb[0].mxu0 %v320
        %v608 = vpop.f32.mrb[0].mxu0
        %v609 = vadd.f32 0.0, %v608
        %v610 = vpop.f32.mrb[0].mxu0
        %v611 = vpop.f32.mrb[0].mxu0
        %v612 = vadd.f32 0.0, %v611
        %v613 = vpop.f32.mrb[0].mxu0
        %614 = vmatprep.mubr.bf16.mxu0 %v326
        %615 = vmatmul.mubr.bf16.gmra.mrb[0].mxu0 %v325
        %v616 = vpop.f32.mrb[0].mxu0
        %v617 = vadd.f32 0.0, %v616
        %v618 = vpop.f32.mrb[0].mxu0
        %v619 = vpop.f32.mrb[0].mxu0
        %v620 = vadd.f32 0.0, %v619
        %v621 = vpop.f32.mrb[0].mxu0
        %622 = vdwg.mxu0
        %623 = vmatprep.subr.bf16.mxu0 0
        %624 = vmatpush1.bf16.msra.mxu0 %v504
        %625 = vmatprep.subr.bf16.mxu0 0
        %626 = vmatpush1.bf16.msra.mxu0 %v505
        %627 = vmatprep.subr.bf16.mxu0 0
        %628 = vmatpush1.bf16.msra.mxu0 %v506
        %629 = vmatprep.subr.bf16.mxu0 0
        %630 = vmatpush1.bf16.msra.mxu0 %v507
        %631 = vmatprep.subr.bf16.mxu0 0
        %632 = vmatpush1.bf16.msra.mxu0 %v508
        %633 = vmatprep.subr.bf16.mxu0 0
        %634 = vmatpush1.bf16.msra.mxu0 %v509
        %635 = vmatprep.subr.bf16.mxu0 0
        %636 = vmatpush1.bf16.msra.mxu0 %v510
        %637 = vmatprep.subr.bf16.mxu0 0
        %638 = vmatpush1.bf16.msra.mxu0 %v511
        %639 = vmatprep.subr.bf16.mxu0 0
        %640 = vmatpush1.bf16.msra.mxu0 %v512
        %641 = vmatprep.subr.bf16.mxu0 0
        %642 = vmatpush1.bf16.msra.mxu0 %v513
        %643 = vmatprep.subr.bf16.mxu0 0
        %644 = vmatpush1.bf16.msra.mxu0 %v514
        %645 = vmatprep.subr.bf16.mxu0 0
        %646 = vmatpush1.bf16.msra.mxu0 %v515
        %647 = vmatprep.subr.bf16.mxu0 0
        %648 = vmatpush1.bf16.msra.mxu0 %v516
        %649 = vmatprep.subr.bf16.mxu0 0
        %650 = vmatpush1.bf16.msra.mxu0 %v517
        %651 = vmatprep.subr.bf16.mxu0 0
        %652 = vmatpush1.bf16.msra.mxu0 %v518
        %653 = vmatprep.subr.bf16.mxu0 0
        %654 = vmatpush1.bf16.msra.mxu0 %v519
        %655 = vmatprep.mubr.bf16.mxu0 %v323
        %656 = vmatmul.mubr.bf16.gmra.mrb[0].mxu0 %v322
        %v657 = vpop.f32.mrb[0].mxu0
        %v658 = vadd.f32 %v609, %v657
        %v659 = vpop.f32.mrb[0].mxu0
        %v660 = vpop.f32.mrb[0].mxu0
        %v661 = vadd.f32 %v612, %v660
        %v662 = vpop.f32.mrb[0].mxu0
        %663 = vmatprep.mubr.bf16.mxu0 %v328
        %664 = vmatmul.mubr.bf16.gmra.mrb[0].mxu0 %v327
        %v665 = vpop.f32.mrb[0].mxu0
        %v666 = vadd.f32 %v617, %v665
        %v667 = vpop.f32.mrb[0].mxu0
        %v668 = vpop.f32.mrb[0].mxu0
        %v669 = vadd.f32 %v620, %v668
        %v670 = vpop.f32.mrb[0].mxu0
        %671 = vdwg.mxu0
        %672 = vmatprep.subr.bf16.mxu0 0
        %673 = vmatpush1.bf16.msra.mxu0 %v520
        %674 = vmatprep.subr.bf16.mxu0 0
        %675 = vmatpush1.bf16.msra.mxu0 %v521
        %676 = vmatprep.subr.bf16.mxu0 0
        %677 = vmatpush1.bf16.msra.mxu0 %v522
        %678 = vmatprep.subr.bf16.mxu0 0
        %679 = vmatpush1.bf16.msra.mxu0 %v523
        %680 = vmatprep.subr.bf16.mxu0 0
        %681 = vmatpush1.bf16.msra.mxu0 %v524
        %682 = vmatprep.subr.bf16.mxu0 0
        %683 = vmatpush1.bf16.msra.mxu0 %v572
        %684 = vmatprep.subr.bf16.mxu0 0
        %685 = vmatpush1.bf16.msra.mxu0 0
        %686 = vmatprep.subr.bf16.mxu0 0
        %687 = vmatpush1.bf16.msra.mxu0 0
        %688 = vmatprep.subr.bf16.mxu0 0
        %689 = vmatpush1.bf16.msra.mxu0 0
        %690 = vmatprep.subr.bf16.mxu0 0
        %691 = vmatpush1.bf16.msra.mxu0 0
        %692 = vmatprep.subr.bf16.mxu0 0
        %693 = vmatpush1.bf16.msra.mxu0 0
        %694 = vmatprep.subr.bf16.mxu0 0
        %695 = vmatpush1.bf16.msra.mxu0 0
        %696 = vmatprep.subr.bf16.mxu0 0
        %697 = vmatpush1.bf16.msra.mxu0 0
        %698 = vmatprep.subr.bf16.mxu0 0
        %699 = vmatpush1.bf16.msra.mxu0 0
        %700 = vmatprep.subr.bf16.mxu0 0
        %701 = vmatpush1.bf16.msra.mxu0 0
        %702 = vmatprep.subr.bf16.mxu0 0
        %703 = vmatpush1.bf16.msra.mxu0 0
        %704 = vmatprep.mubr.bf16.mxu0 0
        %705 = vmatmul.mubr.bf16.gmra.mrb[0].mxu0 %v565
        %v706 = vpop.f32.mrb[0].mxu0
        %v707 = vadd.f32 %v658, %v706
        %v708 = vpop.f32.mrb[0].mxu0
        %v709 = vpop.f32.mrb[0].mxu0
        %v710 = vadd.f32 %v661, %v709
        %v711 = vpop.f32.mrb[0].mxu0
        %712 = vmatprep.mubr.bf16.mxu0 0
        %713 = vmatmul.mubr.bf16.gmra.mrb[0].mxu0 %v568
        %v714 = vpop.f32.mrb[0].mxu0
        %v715 = vadd.f32 %v666, %v714
        %v716 = vpop.f32.mrb[0].mxu0
        %v717 = vpop.f32.mrb[0].mxu0
        %v718 = vadd.f32 %v669, %v717
        %v719 = vpop.f32.mrb[0].mxu0
        %720 = vdwg.mxu0
        %725 = vrot.lane.b32.xlu0 %v707, 112
        %v726 = vpop.permute.xlu0 %725
        %727 = vrot.lane.b32.xlu0 %v710, 112
        %v728 = vpop.permute.xlu0 %727
        %729 = vrot.lane.b32.xlu0 %v715, 112
        %v730 = vpop.permute.xlu0 %729
        %731 = vrot.lane.b32.xlu0 %v718, 112
        %v732 = vpop.permute.xlu0 %731
        %v737 = vmax.f32 %v707, %v726
        %v738 = vmax.f32 %v710, %v728
        %v739 = vmax.f32 %v715, %v730
        %v740 = vmax.f32 %v718, %v732
        %745 = vrot.lane.b32.xlu0 %v737, 96
        %v746 = vpop.permute.xlu0 %745
        %747 = vrot.lane.b32.xlu0 %v738, 96
        %v748 = vpop.permute.xlu0 %747
        %749 = vrot.lane.b32.xlu0 %v739, 96
        %v750 = vpop.permute.xlu0 %749
        %751 = vrot.lane.b32.xlu0 %v740, 96
        %v752 = vpop.permute.xlu0 %751
        %v757 = vmax.f32 %v737, %v746
        %v758 = vmax.f32 %v738, %v748
        %v759 = vmax.f32 %v739, %v750
        %v760 = vmax.f32 %v740, %v752
        %v761 = vld [vmem:[%s2] sm:$0x1]
        %v763 = vlaneseq
        %v764 = vshrl.u32 %v763, 7
        %v765 = vsub.s32 0, %v764
        %v766 = vrot.slane %v761, %v765
        %v768 = vadd.f32 %v757, %v766
        %v769 = vadd.f32 %v758, %v766
        %v770 = vadd.f32 %v759, %v766
        %v771 = vadd.f32 %v760, %v766
        %v772 = vmax.f32 %v768, 0.0
        %v773 = vmax.f32 %v769, 0.0
        %v774 = vmax.f32 %v770, 0.0
        %v775 = vmax.f32 %v771, 0.0
        %v776 = vpack.c.bf16 %v773, %v772
        %v777 = vpack.c.bf16 %v775, %v774
        %v780 = vunpack.c.l.b16 %v776
        %v781 = vunpack.c.h.b16 %v776
        %v782 = vunpack.c.l.b16 %v777
        %v783 = vunpack.c.h.b16 %v777
        %v784 = vpack.c.b16 %v780, %v780
        %v785 = vpack.c.b16 %v781, %v781
        %v786 = vpack.c.b16 %v782, %v782
        %v787 = vpack.c.b16 %v783, %v783
        %vm792 = vcmask 125952
        %793 = vst.msk [vmem:[%s177] sm:$0xf] %vm792, %v784
        %794 = vst.msk [vmem:[%s177 + $0x4] sm:$0xf] %vm792, %v785
        %795 = vst.msk [vmem:[%s177 + $0x8] sm:$0xf] %vm792, %v786
        %796 = vst.msk [vmem:[%s177 + $0xc] sm:$0xf] %vm792, %v787
        %s797 = sand.u32 %s90, 1
        %s798 = sand.u32 %s90, 1
        %s799 = smul.addr %s798, 16
        %s800 = scalar_lea.vmem [#allocation2], %s799
        // Predicated region
        $region33: #{lenet5_forward.4} parent=31 // pred_check
          %p801 = pneg %p100
        $region34: #{lenet5_forward.4} parent=31 // pred_check_branch
          %803 = sbr.rel (%p801) target = $region36
        $region35: #{lenet5_forward.4} parent=31 // pred_region
          %s804 = smul.u32 4, %s14
          %s805 = ssub.s32 7, %s804
          %p806 = scmp.lt.s32.totalorder %s805, 4
          %s807 = scalar_select %p806, %s805, 4
          %s808 = smul.u32 64, %s807
          %p809 = scmp.ne.s32.totalorder 0, %s808
          %s810 = smul.addr %s804, 4
          %s811 = scalar_lea.vmem %s3, %s810
          // Predicated region
          $region37: #{lenet5_forward.4} parent=35 // pred_check
            %p812 = pneg %p809
          $region38: #{lenet5_forward.4} parent=35 // pred_check_branch
            %814 = sbr.rel (%p812) target = $region40
          $region39: #{lenet5_forward.4} parent=35 // pred_region
            // Predicated region
            $region41: #{lenet5_forward.4} parent=39 // pred_check
              _
            $region42: #{lenet5_forward.4} parent=39 // pred_check_branch
              %816 = sbr.rel target = $region44
            $region43: #{lenet5_forward.4} parent=39 // pred_region
              // Predicated region
              $region63: #{lenet5_forward.4} parent=43 // pred_check
                _
              $region64: #{lenet5_forward.4} parent=43 // pred_check_branch
                %871 = sbr.rel (0) target = $region66
              $region65: #{lenet5_forward.4} parent=43 // pred_region
                %s873 = sshrl.u32 %s807, 2
                // While loop
                $region67: #{lenet5_forward.4} parent=65 // loop_pre_header
                  _
                $region68: #{lenet5_forward.4} parent=65 // loop_header
                  %s875 = sphi 0, %s877
                  %p876 = scmp.ge.s32.totalorder %s875, %s873
                  %s880 = sphi 0, %s893
                  %s881 = sphi %s800, %s896
                  %s882 = sphi %s811, %s897
                $region69: #{lenet5_forward.4} parent=65 // loop_header_branch
                  %879 = sbr.rel (%p876) target = $region73
                $region70: #{lenet5_forward.4} parent=65 // loop_body
                  %v883 = vld [vmem:[%s881] sm:$0xf]
                  %884 = vst [vmem:[%s882] sm:$0xf] %v883
                  %v885 = vld [vmem:[%s881 + $0x4] sm:$0xf]
                  %886 = vst [vmem:[%s882 + $0x4] sm:$0xf] %v885
                  %v887 = vld [vmem:[%s881 + $0x8] sm:$0xf]
                  %888 = vst [vmem:[%s882 + $0x8] sm:$0xf] %v887
                  %v889 = vld [vmem:[%s881 + $0xc] sm:$0xf]
                  %890 = vst [vmem:[%s882 + $0xc] sm:$0xf] %v889
                  %s891 = sadd.s32 1, %s880
                  %p892 = scmp.ge.s32.totalorder %s891, %s873
                  %s893 = scalar_select %p892, 0, %s891
                  %s894 = smul.u32 %s893, 16
                  %s895 = smul.u32 %s893, 16
                  %s896 = scalar_lea.vmem %s800, %s894 [#allocation2]
                  %s897 = scalar_lea.vmem %s811, %s895
                $region71: #{lenet5_forward.4} parent=65 // loop_footer
                  %s877 = sadd.s32 %s875, 1
                $region72: #{lenet5_forward.4} parent=65 // loop_footer_branch
                  %874 = sbr.rel target = $region68
                $region73: #{lenet5_forward.4} parent=65 // loop_exit
                  _
                %s898 = sshrl.u32 %s807, 2
                %s899 = sand.u32 %s807, 3
                %s900 = smul.u32 %s898, 4
                %s901 = smul.u32 4, %s900
                %s902 = scalar_lea.vmem %s800, %s901 [#allocation2]
                %s903 = smul.u32 4, %s900
                %s904 = scalar_lea.vmem %s811, %s903
                // While loop
                $region74: #{lenet5_forward.4} parent=65 // loop_pre_header
                  _
                $region75: #{lenet5_forward.4} parent=65 // loop_header
                  %s906 = sphi 0, %s908
                  %p907 = scmp.ge.s32.totalorder %s906, %s899
                  %s911 = sphi 0, %s918
                  %s912 = sphi %s902, %s921
                  %s913 = sphi %s904, %s922
                $region76: #{lenet5_forward.4} parent=65 // loop_header_branch
                  %910 = sbr.rel (%p907) target = $region80
                $region77: #{lenet5_forward.4} parent=65 // loop_body
                  %v914 = vld [vmem:[%s912] sm:$0xf]
                  %915 = vst [vmem:[%s913] sm:$0xf] %v914
                  %s916 = sadd.s32 1, %s911
                  %p917 = scmp.ge.s32.totalorder %s916, %s899
                  %s918 = scalar_select %p917, 0, %s916
                  %s919 = smul.u32 %s918, 4
                  %s920 = smul.u32 %s918, 4
                  %s921 = scalar_lea.vmem %s902, %s919 [#allocation2]
                  %s922 = scalar_lea.vmem %s904, %s920
                $region78: #{lenet5_forward.4} parent=65 // loop_footer
                  %s908 = sadd.s32 %s906, 1
                $region79: #{lenet5_forward.4} parent=65 // loop_footer_branch
                  %905 = sbr.rel target = $region75
                $region80: #{lenet5_forward.4} parent=65 // loop_exit
                  _
              $region66: #{lenet5_forward.4} parent=43 // pred_fallthru
                _
            $region44: #{lenet5_forward.4} parent=39 // pred_fallthru
              _
            // Predicated region
            $region45: #{lenet5_forward.4} parent=39 // pred_check
              _
            $region46: #{lenet5_forward.4} parent=39 // pred_check_branch
              %818 = sbr.rel (0) target = $region48
            $region47: #{lenet5_forward.4} parent=39 // pred_region
              %s820 = sshrl.u32 %s807, 2
              // While loop
              $region49: #{lenet5_forward.4} parent=47 // loop_pre_header
                _
              $region50: #{lenet5_forward.4} parent=47 // loop_header
                %s822 = sphi 0, %s824
                %p823 = scmp.ge.s32.totalorder %s822, %s820
                %s827 = sphi 0, %s840
                %s828 = sphi %s800, %s843
                %s829 = sphi %s811, %s844
              $region51: #{lenet5_forward.4} parent=47 // loop_header_branch
                %826 = sbr.rel (%p823) target = $region55
              $region52: #{lenet5_forward.4} parent=47 // loop_body
                %v830 = vld [vmem:[%s828] sm:$0xf]
                %831 = vst [vmem:[%s829] sm:$0xf] %v830
                %v832 = vld [vmem:[%s828 + $0x4] sm:$0xf]
                %833 = vst [vmem:[%s829 + $0x4] sm:$0xf] %v832
                %v834 = vld [vmem:[%s828 + $0x8] sm:$0xf]
                %835 = vst [vmem:[%s829 + $0x8] sm:$0xf] %v834
                %v836 = vld [vmem:[%s828 + $0xc] sm:$0xf]
                %837 = vst [vmem:[%s829 + $0xc] sm:$0xf] %v836
                %s838 = sadd.s32 1, %s827
                %p839 = scmp.ge.s32.totalorder %s838, %s820
                %s840 = scalar_select %p839, 0, %s838
                %s841 = smul.u32 %s840, 16
                %s842 = smul.u32 %s840, 16
                %s843 = scalar_lea.vmem %s800, %s841 [#allocation2]
                %s844 = scalar_lea.vmem %s811, %s842
              $region53: #{lenet5_forward.4} parent=47 // loop_footer
                %s824 = sadd.s32 %s822, 1
              $region54: #{lenet5_forward.4} parent=47 // loop_footer_branch
                %821 = sbr.rel target = $region50
              $region55: #{lenet5_forward.4} parent=47 // loop_exit
                _
              %s845 = sshrl.u32 %s807, 2
              %s846 = sand.u32 %s807, 3
              %s847 = smul.u32 %s845, 4
              %s848 = smul.u32 4, %s847
              %s849 = scalar_lea.vmem %s800, %s848 [#allocation2]
              %s850 = smul.u32 4, %s847
              %s851 = scalar_lea.vmem %s811, %s850
              // While loop
              $region56: #{lenet5_forward.4} parent=47 // loop_pre_header
                _
              $region57: #{lenet5_forward.4} parent=47 // loop_header
                %s853 = sphi 0, %s855
                %p854 = scmp.ge.s32.totalorder %s853, %s846
                %s858 = sphi 0, %s865
                %s859 = sphi %s849, %s868
                %s860 = sphi %s851, %s869
              $region58: #{lenet5_forward.4} parent=47 // loop_header_branch
                %857 = sbr.rel (%p854) target = $region62
              $region59: #{lenet5_forward.4} parent=47 // loop_body
                %v861 = vld [vmem:[%s859] sm:$0xf]
                %862 = vst [vmem:[%s860] sm:$0xf] %v861
                %s863 = sadd.s32 1, %s858
                %p864 = scmp.ge.s32.totalorder %s863, %s846
                %s865 = scalar_select %p864, 0, %s863
                %s866 = smul.u32 %s865, 4
                %s867 = smul.u32 %s865, 4
                %s868 = scalar_lea.vmem %s849, %s866 [#allocation2]
                %s869 = scalar_lea.vmem %s851, %s867
              $region60: #{lenet5_forward.4} parent=47 // loop_footer
                %s855 = sadd.s32 %s853, 1
              $region61: #{lenet5_forward.4} parent=47 // loop_footer_branch
                %852 = sbr.rel target = $region57
              $region62: #{lenet5_forward.4} parent=47 // loop_exit
                _
            $region48: #{lenet5_forward.4} parent=39 // pred_fallthru
              _
          $region40: #{lenet5_forward.4} parent=35 // pred_fallthru
            _
          %923 = vnop
        $region36: #{lenet5_forward.4} parent=31 // pred_fallthru
          _
      $region32: #{lenet5_forward.4} parent=5 // pred_fallthru
        _
      %p924 = scmp.le.s32.totalorder 2, %s9
      // Predicated region
      $region81: #{lenet5_forward.4} parent=5 // pred_check
        %p925 = pneg %p924
      $region82: #{lenet5_forward.4} parent=5 // pred_check_branch
        %927 = sbr.rel (%p925) target = $region84
      $region83: #{lenet5_forward.4} parent=5 // pred_region
        %s928 = ssub.s32 %s9, 2
        // Predicated region
        $region85: #{lenet5_forward.4} parent=83 // pred_check
          %p929 = pneg %p106
        $region86: #{lenet5_forward.4} parent=83 // pred_check_branch
          %931 = sbr.rel (%p929) target = $region88
        $region87: #{lenet5_forward.4} parent=83 // pred_region
          %s932 = sand.u32 %s91, 1
          %s933 = sand.u32 %s91, 1
          %s934 = smul.addr %s933, 16
          %s935 = scalar_lea.vmem [#allocation2], %s934
        $region88: #{lenet5_forward.4} parent=83 // pred_fallthru
          _
      $region84: #{lenet5_forward.4} parent=5 // pred_fallthru
        _
    $region6: #{lenet5_forward.4} parent=1 // loop_footer
      %s13 = sadd.s32 1, %s9
    $region7: #{lenet5_forward.4} parent=1 // loop_footer_branch
      %8 = sbr.rel target = $region3
    $region8: #{lenet5_forward.4} parent=1 // loop_exit
      _

// kernel: lenet5_forward.5
$region0: #{lenet5_forward.5}
  #allocation0 [shape = 'u32[]', space=smem, size = 0x4, offset = 0x4, fixed_abs, tag = 'smem constant byte address 0x4 - core index']
  #allocation1 [shape = 'u32[144,128]{1,0:T(1,128)}', space=vmem, size = 0x12000, scoped, tag = 'internal scratch']
  %s0 = inlined_call_operand.vmem [shape: bf16[2,400], index: 0, kind: input, shape index: {}]
  %s1 = inlined_call_operand.vmem [shape: bf16[400,128], index: 1, kind: input, shape index: {}]
  %s2 = inlined_call_operand.vmem [shape: f32[1,128], index: 2, kind: input, shape index: {}]
  %s3 = inlined_call_operand.vmem [shape: bf16[128,128], index: 3, kind: input, shape index: {}]
  %s4 = inlined_call_operand.vmem [shape: f32[1,128], index: 4, kind: input, shape index: {}]
  %s5 = inlined_call_operand.vmem [shape: bf16[128,10], index: 5, kind: input, shape index: {}]
  %s6 = inlined_call_operand.vmem [shape: f32[1,10], index: 6, kind: input, shape index: {}]
  %s7 = inlined_call_operand.hbm [shape: f32[2,10], index: 7, kind: output, shape index: {}]
  %s8 = sld [smem:[#allocation0]]
  $region38: #{lenet5_forward.5} parent=0
    _
  %s10 = ssub.s32 1, %s8
  %s11 = scalar_select 0, %s10, %s8
  $region1: #{lenet5_forward.5} parent=0
    #allocation2 [shape = 'u8[1024]{0}', space=vmem, size = 0x400, scoped, tag = 'output window, operand 0, single buffered']
    #allocation3 [shape = 's32[1]{0}', space=sflag, size = 0x4, scoped, tag = 'scoped memory for lenet5_forward.5']
    %12 = vsyncpa [#allocation3], 0
    // Predicated region
    $region2: #{lenet5_forward.5} parent=1 // pred_check
      _
    $region3: #{lenet5_forward.5} parent=1 // pred_check_branch
      %14 = sbr.rel (0) target = $region5
    $region4: #{lenet5_forward.5} parent=1 // pred_region
      _
    $region5: #{lenet5_forward.5} parent=1 // pred_fallthru
      _
    // Predicated region
    $region6: #{lenet5_forward.5} parent=1 // pred_check
      _
    $region7: #{lenet5_forward.5} parent=1 // pred_check_branch
      %16 = sbr.rel (0) target = $region9
    $region8: #{lenet5_forward.5} parent=1 // pred_region
      _
    $region9: #{lenet5_forward.5} parent=1 // pred_fallthru
      _
    // Predicated region
    $region10: #{lenet5_forward.5} parent=1 // pred_check
      _
    $region11: #{lenet5_forward.5} parent=1 // pred_check_branch
      %18 = sbr.rel (0) target = $region13
    $region12: #{lenet5_forward.5} parent=1 // pred_region
      _
    $region13: #{lenet5_forward.5} parent=1 // pred_fallthru
      _
    // Predicated region
    $region14: #{lenet5_forward.5} parent=1 // pred_check
      _
    $region15: #{lenet5_forward.5} parent=1 // pred_check_branch
      %20 = sbr.rel (0) target = $region17
    $region16: #{lenet5_forward.5} parent=1 // pred_region
      _
    $region17: #{lenet5_forward.5} parent=1 // pred_fallthru
      _
    // Predicated region
    $region18: #{lenet5_forward.5} parent=1 // pred_check
      _
    $region19: #{lenet5_forward.5} parent=1 // pred_check_branch
      %22 = sbr.rel (0) target = $region21
    $region20: #{lenet5_forward.5} parent=1 // pred_region
      _
    $region21: #{lenet5_forward.5} parent=1 // pred_fallthru
      _
    // Predicated region
    $region22: #{lenet5_forward.5} parent=1 // pred_check
      _
    $region23: #{lenet5_forward.5} parent=1 // pred_check_branch
      %24 = sbr.rel (0) target = $region25
    $region24: #{lenet5_forward.5} parent=1 // pred_region
      _
    $region25: #{lenet5_forward.5} parent=1 // pred_fallthru
      _
    // Predicated region
    $region26: #{lenet5_forward.5} parent=1 // pred_check
      _
    $region27: #{lenet5_forward.5} parent=1 // pred_check_branch
      %26 = sbr.rel (0) target = $region29
    $region28: #{lenet5_forward.5} parent=1 // pred_region
      _
    $region29: #{lenet5_forward.5} parent=1 // pred_fallthru
      _
    %v28 = vld [vmem:[%s0] sm:$0xf]
    %v29 = vld [vmem:[%s1] sm:$0xf]
    %v30 = vld [vmem:[%s1 + $0x4] sm:$0xf]
    %v31 = vld [vmem:[%s1 + $0x8] sm:$0xf]
    %v32 = vld [vmem:[%s1 + $0xc] sm:$0xf]
    %v33 = vld [vmem:[%s1 + $0x10] sm:$0xf]
    %v34 = vld [vmem:[%s1 + $0x14] sm:$0xf]
    %v35 = vld [vmem:[%s1 + $0x18] sm:$0xf]
    %v36 = vld [vmem:[%s1 + $0x1c] sm:$0xf]
    %v37 = vld [vmem:[%s1 + $0x20] sm:$0xf]
    %v38 = vld [vmem:[%s1 + $0x24] sm:$0xf]
    %v39 = vld [vmem:[%s1 + $0x28] sm:$0xf]
    %v40 = vld [vmem:[%s1 + $0x2c] sm:$0xf]
    %v41 = vld [vmem:[%s1 + $0x30] sm:$0xf]
    %v42 = vld [vmem:[%s1 + $0x34] sm:$0xf]
    %v43 = vld [vmem:[%s1 + $0x38] sm:$0xf]
    %v44 = vld [vmem:[%s1 + $0x3c] sm:$0xf]
    %v45 = vld [vmem:[%s1 + $0x40] sm:$0xf]
    %v46 = vld [vmem:[%s1 + $0x44] sm:$0xf]
    %v47 = vld [vmem:[%s1 + $0x48] sm:$0xf]
    %v48 = vld [vmem:[%s1 + $0x4c] sm:$0xf]
    %v49 = vld [vmem:[%s1 + $0x50] sm:$0xf]
    %v50 = vld [vmem:[%s1 + $0x54] sm:$0xf]
    %v51 = vld [vmem:[%s1 + $0x58] sm:$0xf]
    %v52 = vld [vmem:[%s1 + $0x5c] sm:$0xf]
    %v53 = vld [vmem:[%s1 + $0x60] sm:$0xf]
    %v54 = vld [vmem:[%s1 + $0x64] sm:$0xf]
    %v55 = vld [vmem:[%s1 + $0x68] sm:$0xf]
    %v56 = vld [vmem:[%s1 + $0x6c] sm:$0xf]
    %v57 = vld [vmem:[%s1 + $0x70] sm:$0xf]
    %v58 = vld [vmem:[%s1 + $0x74] sm:$0xf]
    %v59 = vld [vmem:[%s1 + $0x78] sm:$0xf]
    %v60 = vld [vmem:[%s1 + $0x7c] sm:$0xf]
    %v61 = vld [vmem:[%s1 + $0x80] sm:$0xf]
    %v62 = vld [vmem:[%s1 + $0x84] sm:$0xf]
    %v63 = vld [vmem:[%s1 + $0x88] sm:$0xf]
    %v64 = vld [vmem:[%s1 + $0x8c] sm:$0xf]
    %v65 = vld [vmem:[%s1 + $0x90] sm:$0xf]
    %v66 = vld [vmem:[%s1 + $0x94] sm:$0xf]
    %v67 = vld [vmem:[%s1 + $0x98] sm:$0xf]
    %v68 = vld [vmem:[%s1 + $0x9c] sm:$0xf]
    %v69 = vld [vmem:[%s1 + $0xa0] sm:$0xf]
    %v70 = vld [vmem:[%s1 + $0xa4] sm:$0xf]
    %v71 = vld [vmem:[%s1 + $0xa8] sm:$0xf]
    %v72 = vld [vmem:[%s1 + $0xac] sm:$0xf]
    %v73 = vld [vmem:[%s1 + $0xb0] sm:$0xf]
    %v74 = vld [vmem:[%s1 + $0xb4] sm:$0xf]
    %v75 = vld [vmem:[%s1 + $0xb8] sm:$0xf]
    %v76 = vld [vmem:[%s1 + $0xbc] sm:$0xf]
    %v77 = vld [vmem:[%s1 + $0xc0] sm:$0xf]
    %v78 = vld [vmem:[%s1 + $0xc4] sm:$0xf]
    %v79 = vld [vmem:[%s2] sm:$0x1]
    %v81 = vlaneseq
    %v82 = vshrl.u32 %v81, 7
    %v83 = vsub.s32 0, %v82
    %v84 = vrot.slane %v79, %v83
    %v88 = vunpack.c.l.s4 1966171168
    %v89 = vunpack.c.0.s8 %v88
    %v90 = vlaneseq
    %v91 = vshrl.u32 %v90, 7
    %v92 = vsub.s32 %v89, %v91
    %v93 = vrot.slane %v28, %v92
    %v94 = vcombine.high %v93, %v93
    %v96 = vunpack.c.l.s4 1966171168
    %v97 = vunpack.c.0.s8 %v96
    %v98 = vlaneseq
    %v99 = vshrl.u32 %v98, 7
    %v100 = vsub.s32 %v97, %v99
    %v101 = vrot.slane %v93, %v100
    %v103 = vunpack.c.l.s4 1966171168
    %v104 = vunpack.c.0.s8 %v103
    %v105 = vlaneseq
    %v106 = vshrl.u32 %v105, 7
    %v107 = vsub.s32 %v104, %v106
    %v108 = vrot.slane %v94, %v107
    %v109 = vcombine.high %v101, %v101
    %v110 = vcombine.high %v108, %v108
    %v164 = vunpack.c.l.b16 %v29
    %v165 = vunpack.c.l.b16 %v30
    %v166 = vunpack.c.l.b16 %v31
    %v167 = vunpack.c.l.b16 %v32
    %v168 = vunpack.c.l.b16 %v33
    %v169 = vunpack.c.l.b16 %v34
    %v170 = vunpack.c.l.b16 %v35
    %v171 = vunpack.c.l.b16 %v36
    %v172 = vunpack.c.l.b16 %v37
    %v173 = vunpack.c.l.b16 %v38
    %v174 = vunpack.c.l.b16 %v39
    %v175 = vunpack.c.l.b16 %v40
    %v176 = vunpack.c.l.b16 %v41
    %v177 = vunpack.c.l.b16 %v42
    %v178 = vunpack.c.l.b16 %v43
    %v179 = vunpack.c.l.b16 %v44
    %v180 = vunpack.c.l.b16 %v45
    %v181 = vunpack.c.l.b16 %v46
    %v182 = vunpack.c.l.b16 %v47
    %v183 = vunpack.c.l.b16 %v48
    %v184 = vunpack.c.l.b16 %v49
    %v185 = vunpack.c.l.b16 %v50
    %v186 = vunpack.c.l.b16 %v51
    %v187 = vunpack.c.l.b16 %v52
    %v188 = vunpack.c.l.b16 %v53
    %v189 = vunpack.c.l.b16 %v54
    %v190 = vunpack.c.l.b16 %v55
    %v191 = vunpack.c.l.b16 %v56
    %v192 = vunpack.c.l.b16 %v57
    %v193 = vunpack.c.l.b16 %v58
    %v194 = vunpack.c.l.b16 %v59
    %v195 = vunpack.c.l.b16 %v60
    %v196 = vunpack.c.l.b16 %v61
    %v197 = vunpack.c.l.b16 %v62
    %v198 = vunpack.c.l.b16 %v63
    %v199 = vunpack.c.l.b16 %v64
    %v200 = vunpack.c.l.b16 %v65
    %v201 = vunpack.c.l.b16 %v66
    %v202 = vunpack.c.l.b16 %v67
    %v203 = vunpack.c.l.b16 %v68
    %v204 = vunpack.c.l.b16 %v69
    %v205 = vunpack.c.l.b16 %v70
    %v206 = vunpack.c.l.b16 %v71
    %v207 = vunpack.c.l.b16 %v72
    %v208 = vunpack.c.l.b16 %v73
    %v209 = vunpack.c.l.b16 %v74
    %v210 = vunpack.c.l.b16 %v75
    %v211 = vunpack.c.l.b16 %v76
    %v212 = vunpack.c.l.b16 %v77
    %v213 = vunpack.c.l.b16 %v78
    %v214 = vpack.c.b16 %v165, %v164
    %v215 = vpack.c.b16 %v167, %v166
    %v216 = vpack.c.b16 %v169, %v168
    %v217 = vpack.c.b16 %v171, %v170
    %v218 = vpack.c.b16 %v173, %v172
    %v219 = vpack.c.b16 %v175, %v174
    %v220 = vpack.c.b16 %v177, %v176
    %v221 = vpack.c.b16 %v179, %v178
    %v222 = vpack.c.b16 %v181, %v180
    %v223 = vpack.c.b16 %v183, %v182
    %v224 = vpack.c.b16 %v185, %v184
    %v225 = vpack.c.b16 %v187, %v186
    %v226 = vpack.c.b16 %v189, %v188
    %v227 = vpack.c.b16 %v191, %v190
    %v228 = vpack.c.b16 %v193, %v192
    %v229 = vpack.c.b16 %v195, %v194
    %v230 = vpack.c.b16 %v197, %v196
    %v231 = vpack.c.b16 %v199, %v198
    %v232 = vpack.c.b16 %v201, %v200
    %v233 = vpack.c.b16 %v203, %v202
    %v234 = vpack.c.b16 %v205, %v204
    %v235 = vpack.c.b16 %v207, %v206
    %v236 = vpack.c.b16 %v209, %v208
    %v237 = vpack.c.b16 %v211, %v210
    %v238 = vpack.c.b16 %v213, %v212
    %vm264 = vcmask 130048
    %v266 = vsel %vm264, %v110, 0
    %268 = vmatprep.subr.bf16.mxu0 0
    %269 = vmatpush1.bf16.msra.mxu0 %v214
    %270 = vmatprep.subr.bf16.mxu0 0
    %271 = vmatpush1.bf16.msra.mxu0 %v215
    %272 = vmatprep.subr.bf16.mxu0 0
    %273 = vmatpush1.bf16.msra.mxu0 %v216
    %274 = vmatprep.subr.bf16.mxu0 0
    %275 = vmatpush1.bf16.msra.mxu0 %v217
    %276 = vmatprep.subr.bf16.mxu0 0
    %277 = vmatpush1.bf16.msra.mxu0 %v218
    %278 = vmatprep.subr.bf16.mxu0 0
    %279 = vmatpush1.bf16.msra.mxu0 %v219
    %280 = vmatprep.subr.bf16.mxu0 0
    %281 = vmatpush1.bf16.msra.mxu0 %v220
    %282 = vmatprep.subr.bf16.mxu0 0
    %283 = vmatpush1.bf16.msra.mxu0 %v221
    %284 = vmatprep.subr.bf16.mxu0 0
    %285 = vmatpush1.bf16.msra.mxu0 %v222
    %286 = vmatprep.subr.bf16.mxu0 0
    %287 = vmatpush1.bf16.msra.mxu0 %v223
    %288 = vmatprep.subr.bf16.mxu0 0
    %289 = vmatpush1.bf16.msra.mxu0 %v224
    %290 = vmatprep.subr.bf16.mxu0 0
    %291 = vmatpush1.bf16.msra.mxu0 %v225
    %292 = vmatprep.subr.bf16.mxu0 0
    %293 = vmatpush1.bf16.msra.mxu0 %v226
    %294 = vmatprep.subr.bf16.mxu0 0
    %295 = vmatpush1.bf16.msra.mxu0 %v227
    %296 = vmatprep.subr.bf16.mxu0 0
    %297 = vmatpush1.bf16.msra.mxu0 %v228
    %298 = vmatprep.subr.bf16.mxu0 0
    %299 = vmatpush1.bf16.msra.mxu0 %v229
    %300 = vmatprep.mubr.bf16.mxu0 %v108
    %301 = vmatmul.mubr.bf16.gmra.mrb[0].mxu0 %v101
    %v302 = vpop.f32.mrb[0].mxu0
    %v303 = vadd.f32 %v84, %v302
    %v304 = vpop.f32.mrb[0].mxu0
    %v305 = vpop.f32.mrb[0].mxu0
    %v306 = vpop.f32.mrb[0].mxu0
    %307 = vdwg.mxu0
    %308 = vmatprep.subr.bf16.mxu0 0
    %309 = vmatpush1.bf16.msra.mxu0 %v230
    %310 = vmatprep.subr.bf16.mxu0 0
    %311 = vmatpush1.bf16.msra.mxu0 %v231
    %312 = vmatprep.subr.bf16.mxu0 0
    %313 = vmatpush1.bf16.msra.mxu0 %v232
    %314 = vmatprep.subr.bf16.mxu0 0
    %315 = vmatpush1.bf16.msra.mxu0 %v233
    %316 = vmatprep.subr.bf16.mxu0 0
    %317 = vmatpush1.bf16.msra.mxu0 %v234
    %318 = vmatprep.subr.bf16.mxu0 0
    %319 = vmatpush1.bf16.msra.mxu0 %v235
    %320 = vmatprep.subr.bf16.mxu0 0
    %321 = vmatpush1.bf16.msra.mxu0 %v236
    %322 = vmatprep.subr.bf16.mxu0 0
    %323 = vmatpush1.bf16.msra.mxu0 %v237
    %324 = vmatprep.subr.bf16.mxu0 0
    %325 = vmatpush1.bf16.msra.mxu0 %v238
    %326 = vmatprep.subr.bf16.mxu0 0
    %327 = vmatpush1.bf16.msra.mxu0 0
    %328 = vmatprep.subr.bf16.mxu0 0
    %329 = vmatpush1.bf16.msra.mxu0 0
    %330 = vmatprep.subr.bf16.mxu0 0
    %331 = vmatpush1.bf16.msra.mxu0 0
    %332 = vmatprep.subr.bf16.mxu0 0
    %333 = vmatpush1.bf16.msra.mxu0 0
    %334 = vmatprep.subr.bf16.mxu0 0
    %335 = vmatpush1.bf16.msra.mxu0 0
    %336 = vmatprep.subr.bf16.mxu0 0
    %337 = vmatpush1.bf16.msra.mxu0 0
    %338 = vmatprep.subr.bf16.mxu0 0
    %339 = vmatpush1.bf16.msra.mxu0 0
    %340 = vmatprep.mubr.bf16.mxu0 %v266
    %341 = vmatmul.mubr.bf16.gmra.mrb[0].mxu0 %v109
    %v342 = vpop.f32.mrb[0].mxu0
    %v343 = vadd.f32 %v303, %v342
    %v344 = vpop.f32.mrb[0].mxu0
    %v345 = vpop.f32.mrb[0].mxu0
    %v346 = vpop.f32.mrb[0].mxu0
    %347 = vdwg.mxu0
    %v348 = vmax.f32 %v343, 0.0
    %v349 = vpack.c.bf16 %v348, %v348
    %v350 = vld [vmem:[%s3] sm:$0xf]
    %v351 = vld [vmem:[%s3 + $0x4] sm:$0xf]
    %v352 = vld [vmem:[%s3 + $0x8] sm:$0xf]
    %v353 = vld [vmem:[%s3 + $0xc] sm:$0xf]
    %v354 = vld [vmem:[%s3 + $0x10] sm:$0xf]
    %v355 = vld [vmem:[%s3 + $0x14] sm:$0xf]
    %v356 = vld [vmem:[%s3 + $0x18] sm:$0xf]
    %v357 = vld [vmem:[%s3 + $0x1c] sm:$0xf]
    %v358 = vld [vmem:[%s3 + $0x20] sm:$0xf]
    %v359 = vld [vmem:[%s3 + $0x24] sm:$0xf]
    %v360 = vld [vmem:[%s3 + $0x28] sm:$0xf]
    %v361 = vld [vmem:[%s3 + $0x2c] sm:$0xf]
    %v362 = vld [vmem:[%s3 + $0x30] sm:$0xf]
    %v363 = vld [vmem:[%s3 + $0x34] sm:$0xf]
    %v364 = vld [vmem:[%s3 + $0x38] sm:$0xf]
    %v365 = vld [vmem:[%s3 + $0x3c] sm:$0xf]
    %v366 = vld [vmem:[%s4] sm:$0x1]
    %v368 = vlaneseq
    %v369 = vshrl.u32 %v368, 7
    %v370 = vsub.s32 0, %v369
    %v371 = vrot.slane %v366, %v370
    %v389 = vunpack.c.l.b16 %v350
    %v390 = vunpack.c.l.b16 %v351
    %v391 = vunpack.c.l.b16 %v352
    %v392 = vunpack.c.l.b16 %v353
    %v393 = vunpack.c.l.b16 %v354
    %v394 = vunpack.c.l.b16 %v355
    %v395 = vunpack.c.l.b16 %v356
    %v396 = vunpack.c.l.b16 %v357
    %v397 = vunpack.c.l.b16 %v358
    %v398 = vunpack.c.l.b16 %v359
    %v399 = vunpack.c.l.b16 %v360
    %v400 = vunpack.c.l.b16 %v361
    %v401 = vunpack.c.l.b16 %v362
    %v402 = vunpack.c.l.b16 %v363
    %v403 = vunpack.c.l.b16 %v364
    %v404 = vunpack.c.l.b16 %v365
    %v405 = vpack.c.b16 %v390, %v389
    %v406 = vpack.c.b16 %v392, %v391
    %v407 = vpack.c.b16 %v394, %v393
    %v408 = vpack.c.b16 %v396, %v395
    %v409 = vpack.c.b16 %v398, %v397
    %v410 = vpack.c.b16 %v400, %v399
    %v411 = vpack.c.b16 %v402, %v401
    %v412 = vpack.c.b16 %v404, %v403
    %421 = vmatprep.subr.bf16.mxu0 0
    %422 = vmatpush1.bf16.msra.mxu0 %v405
    %423 = vmatprep.subr.bf16.mxu0 0
    %424 = vmatpush1.bf16.msra.mxu0 %v406
    %425 = vmatprep.subr.bf16.mxu0 0
    %426 = vmatpush1.bf16.msra.mxu0 %v407
    %427 = vmatprep.subr.bf16.mxu0 0
    %428 = vmatpush1.bf16.msra.mxu0 %v408
    %429 = vmatprep.subr.bf16.mxu0 0
    %430 = vmatpush1.bf16.msra.mxu0 %v409
    %431 = vmatprep.subr.bf16.mxu0 0
    %432 = vmatpush1.bf16.msra.mxu0 %v410
    %433 = vmatprep.subr.bf16.mxu0 0
    %434 = vmatpush1.bf16.msra.mxu0 %v411
    %435 = vmatprep.subr.bf16.mxu0 0
    %436 = vmatpush1.bf16.msra.mxu0 %v412
    %437 = vmatprep.subr.bf16.mxu0 0
    %438 = vmatpush1.bf16.msra.mxu0 0
    %439 = vmatprep.subr.bf16.mxu0 0
    %440 = vmatpush1.bf16.msra.mxu0 0
    %441 = vmatprep.subr.bf16.mxu0 0
    %442 = vmatpush1.bf16.msra.mxu0 0
    %443 = vmatprep.subr.bf16.mxu0 0
    %444 = vmatpush1.bf16.msra.mxu0 0
    %445 = vmatprep.subr.bf16.mxu0 0
    %446 = vmatpush1.bf16.msra.mxu0 0
    %447 = vmatprep.subr.bf16.mxu0 0
    %448 = vmatpush1.bf16.msra.mxu0 0
    %449 = vmatprep.subr.bf16.mxu0 0
    %450 = vmatpush1.bf16.msra.mxu0 0
    %451 = vmatprep.subr.bf16.mxu0 0
    %452 = vmatpush1.bf16.msra.mxu0 0
    %453 = vmatprep.mubr.bf16.mxu0 0
    %454 = vmatmul.mubr.bf16.gmra.mrb[0].mxu0 %v349
    %v455 = vpop.f32.mrb[0].mxu0
    %v456 = vadd.f32 %v371, %v455
    %v457 = vpop.f32.mrb[0].mxu0
    %v458 = vpop.f32.mrb[0].mxu0
    %v459 = vpop.f32.mrb[0].mxu0
    %460 = vdwg.mxu0
    %v461 = vmax.f32 %v456, 0.0
    %v462 = vpack.c.bf16 %v461, %v461
    %v463 = vld [vmem:[%s5] sm:$0xf]
    %v464 = vld [vmem:[%s5 + $0x4] sm:$0xf]
    %v465 = vld [vmem:[%s5 + $0x8] sm:$0xf]
    %v466 = vld [vmem:[%s5 + $0xc] sm:$0xf]
    %v467 = vld [vmem:[%s5 + $0x10] sm:$0xf]
    %v468 = vld [vmem:[%s5 + $0x14] sm:$0xf]
    %v469 = vld [vmem:[%s5 + $0x18] sm:$0xf]
    %v470 = vld [vmem:[%s5 + $0x1c] sm:$0xf]
    %v471 = vld [vmem:[%s5 + $0x20] sm:$0xf]
    %v472 = vld [vmem:[%s5 + $0x24] sm:$0xf]
    %v473 = vld [vmem:[%s5 + $0x28] sm:$0xf]
    %v474 = vld [vmem:[%s5 + $0x2c] sm:$0xf]
    %v475 = vld [vmem:[%s5 + $0x30] sm:$0xf]
    %v476 = vld [vmem:[%s5 + $0x34] sm:$0xf]
    %v477 = vld [vmem:[%s5 + $0x38] sm:$0xf]
    %v478 = vld [vmem:[%s5 + $0x3c] sm:$0xf]
    %v479 = vld [vmem:[%s6] sm:$0x1]
    %v481 = vlaneseq
    %v482 = vshrl.u32 %v481, 7
    %v483 = vsub.s32 0, %v482
    %v484 = vrot.slane %v479, %v483
    %v502 = vunpack.c.l.b16 %v463
    %v503 = vunpack.c.l.b16 %v464
    %v504 = vunpack.c.l.b16 %v465
    %v505 = vunpack.c.l.b16 %v466
    %v506 = vunpack.c.l.b16 %v467
    %v507 = vunpack.c.l.b16 %v468
    %v508 = vunpack.c.l.b16 %v469
    %v509 = vunpack.c.l.b16 %v470
    %v510 = vunpack.c.l.b16 %v471
    %v511 = vunpack.c.l.b16 %v472
    %v512 = vunpack.c.l.b16 %v473
    %v513 = vunpack.c.l.b16 %v474
    %v514 = vunpack.c.l.b16 %v475
    %v515 = vunpack.c.l.b16 %v476
    %v516 = vunpack.c.l.b16 %v477
    %v517 = vunpack.c.l.b16 %v478
    %v518 = vpack.c.b16 %v503, %v502
    %v519 = vpack.c.b16 %v505, %v504
    %v520 = vpack.c.b16 %v507, %v506
    %v521 = vpack.c.b16 %v509, %v508
    %v522 = vpack.c.b16 %v511, %v510
    %v523 = vpack.c.b16 %v513, %v512
    %v524 = vpack.c.b16 %v515, %v514
    %v525 = vpack.c.b16 %v517, %v516
    %534 = vmatprep.subr.bf16.mxu0 0
    %535 = vmatpush1.bf16.msra.mxu0 %v518
    %536 = vmatprep.subr.bf16.mxu0 0
    %537 = vmatpush1.bf16.msra.mxu0 %v519
    %538 = vmatprep.subr.bf16.mxu0 0
    %539 = vmatpush1.bf16.msra.mxu0 %v520
    %540 = vmatprep.subr.bf16.mxu0 0
    %541 = vmatpush1.bf16.msra.mxu0 %v521
    %542 = vmatprep.subr.bf16.mxu0 0
    %543 = vmatpush1.bf16.msra.mxu0 %v522
    %544 = vmatprep.subr.bf16.mxu0 0
    %545 = vmatpush1.bf16.msra.mxu0 %v523
    %546 = vmatprep.subr.bf16.mxu0 0
    %547 = vmatpush1.bf16.msra.mxu0 %v524
    %548 = vmatprep.subr.bf16.mxu0 0
    %549 = vmatpush1.bf16.msra.mxu0 %v525
    %550 = vmatprep.subr.bf16.mxu0 0
    %551 = vmatpush1.bf16.msra.mxu0 0
    %552 = vmatprep.subr.bf16.mxu0 0
    %553 = vmatpush1.bf16.msra.mxu0 0
    %554 = vmatprep.subr.bf16.mxu0 0
    %555 = vmatpush1.bf16.msra.mxu0 0
    %556 = vmatprep.subr.bf16.mxu0 0
    %557 = vmatpush1.bf16.msra.mxu0 0
    %558 = vmatprep.subr.bf16.mxu0 0
    %559 = vmatpush1.bf16.msra.mxu0 0
    %560 = vmatprep.subr.bf16.mxu0 0
    %561 = vmatpush1.bf16.msra.mxu0 0
    %562 = vmatprep.subr.bf16.mxu0 0
    %563 = vmatpush1.bf16.msra.mxu0 0
    %564 = vmatprep.subr.bf16.mxu0 0
    %565 = vmatpush1.bf16.msra.mxu0 0
    %566 = vmatprep.mubr.bf16.mxu0 0
    %567 = vmatmul.mubr.bf16.gmra.mrb[0].mxu0 %v462
    %v568 = vpop.f32.mrb[0].mxu0
    %v569 = vadd.f32 %v484, %v568
    %v570 = vpop.f32.mrb[0].mxu0
    %v571 = vpop.f32.mrb[0].mxu0
    %v572 = vpop.f32.mrb[0].mxu0
    %573 = vdwg.mxu0
    %vm574 = vcmask 74752
    %575 = vst.msk [vmem:[#allocation2] sm:$0x3] %vm574, %v569
    // Predicated region
    $region30: #{lenet5_forward.5} parent=1 // pred_check
      _
    $region31: #{lenet5_forward.5} parent=1 // pred_check_branch
      %577 = sbr.rel (0) target = $region33
    $region32: #{lenet5_forward.5} parent=1 // pred_region
      %s579 = ssub.s32 32, 32
      %580 = vsyncadd [#allocation3], %s579
      %s582 = sshll.u32 [#allocation2], 4
      %s583 = int_to_ptr.vmem [resolvable:$true] %s582
      %585 = dma.vmem_to_hbm [thread:$0]  %s583, 32, %s7, [#allocation3]
    $region33: #{lenet5_forward.5} parent=1 // pred_fallthru
      _
    // Predicated region
    $region34: #{lenet5_forward.5} parent=1 // pred_check
      _
    $region35: #{lenet5_forward.5} parent=1 // pred_check_branch
      %587 = sbr.rel (0) target = $region37
    $region36: #{lenet5_forward.5} parent=1 // pred_region
      %588 = dma.done [#allocation3], 32
    $region37: #{lenet5_forward.5} parent=1 // pred_fallthru
      _
    %589 = vsyncpa [#allocation3], 1

</llo_original>
